<compile_context>
chip_gen: v7x
topology: tpu7x:2x2x1
jax: 0.10.0
libtpu: 0.0.40
codegen_flags: <defaults>
</compile_context>

<pallas_src>
import functools

import jax
import jax.numpy as jnp
from jax import lax
from jax.experimental import pallas as pl
from jax.experimental.pallas import tpu as pltpu


def _round_up(x, m):
    return ((x + m - 1) // m) * m


def _resident_spec(shape):
    """Constant-index (resident-in-VMEM) input, single-buffered when supported."""
    idx = lambda i: (0,) * len(shape)
    buffered = getattr(pl, "Buffered", None)
    if buffered is not None:
        try:
            return pl.BlockSpec(shape, idx, pipeline_mode=buffered(1))
        except TypeError:
            pass
    return pl.BlockSpec(shape, idx)


def _hard_darkrank_kernel(s_lhs_ref, t_lhs_ref, sq_s_col_ref, sq_t_col_ref,
                          s_rhs_ref, t_rhs_ref, sq_s_row_ref, sq_t_row_ref,
                          out_ref, *, n, tm, n_pad, alpha, beta, permute_len, eps):
    big = jnp.float32(3e38)
    row0 = pl.program_id(0) * tm

    # Standard (M, K) x (K, N) MXU matmuls: per-step LHS row tiles against the
    # resident, pre-transposed (Dp, Np) embeddings.
    prod_t = jnp.dot(t_lhs_ref[...], t_rhs_ref[...],
                     preferred_element_type=jnp.float32)                  # (TM, Np)
    prod_s = jnp.dot(s_lhs_ref[...], s_rhs_ref[...],
                     preferred_element_type=jnp.float32)                  # (TM, Np)

    # Clamped squared pairwise distances. The teacher side is only used for
    # ranking (score = -alpha * d^beta is strictly decreasing in d^2, so
    # argmin d^2 == argmax score) -> no sqrt/pow over the full teacher slab.
    d2_t = jnp.maximum(sq_t_col_ref[...] + sq_t_row_ref[...] - 2.0 * prod_t, eps)
    d2_s = jnp.maximum(sq_s_col_ref[...] + sq_s_row_ref[...] - 2.0 * prod_s, eps)

    col = lax.broadcasted_iota(jnp.int32, (tm, n_pad), 1)
    row = lax.broadcasted_iota(jnp.int32, (tm, n_pad), 0) + row0
    # Mask the diagonal (the reference's k == 0 self pick) and lane-pad columns.
    invalid = jnp.logical_or(col == row, col >= n)
    cur = jnp.where(invalid, big, d2_t)

    # Iterative top-P teacher selection (smallest clamped d^2 first, ties ->
    # smallest index, matching a stable descending score sort), gathering the
    # student's clamped squared distance at each selected index.
    gathered = []
    for k in range(permute_len):
        m = jnp.min(cur, axis=1, keepdims=True)                                # (TM, 1)
        idx = jnp.min(jnp.where(cur == m, col, n_pad), axis=1, keepdims=True)  # first occurrence
        sel = col == idx
        gathered.append(jnp.sum(jnp.where(sel, d2_s, 0.0), axis=1, keepdims=True))
        if k + 1 < permute_len:
            cur = jnp.where(sel, big, cur)

    # Student scores only for the P gathered values per row.
    neg_alpha = jnp.float32(-alpha)
    gs = [neg_alpha * (jnp.sqrt(v) ** beta) for v in gathered]                 # each (TM, 1)

    # ListMLE: sum_j (g_j - logsumexp(g_{j:})) via a reversed running logsumexp.
    lse = gs[-1]
    log_prob = jnp.zeros_like(lse)                 # the j = P-1 term is identically zero
    for j in range(permute_len - 2, -1, -1):
        mx = jnp.maximum(gs[j], lse)
        lse = mx + jnp.log(jnp.exp(gs[j] - mx) + jnp.exp(lse - mx))
        log_prob = log_prob + (gs[j] - lse)

    valid_row = (lax.broadcasted_iota(jnp.int32, (tm, 1), 0) + row0) < n
    tile_sum = jnp.sum(jnp.where(valid_row, -log_prob, 0.0))
    out_ref[...] = jnp.broadcast_to(tile_sum.astype(jnp.float32), (1, 8, 128))


def _choose_tm(n_pad, d_pad, vmem_budget, requested=None):
    """Pick the row-tile size TM from the per-core VMEM budget."""
    resident = 2 * n_pad * d_pad * 4 + 2 * n_pad * 4     # single-buffered RHS + norm rows

    def step_bytes(tm):
        # ~7 live (TM, Np) f32/i32 slabs + double-buffered (TM, Dp) LHS tiles.
        return 28 * tm * n_pad + 16 * tm * d_pad

    if requested is not None:
        cand = [int(requested), 256, 128, 64, 32, 16, 8]
    elif vmem_budget >= (80 << 20):                       # v5e / v6e (128 MiB physical VMEM)
        cand = [512, 256, 128, 64, 32, 16, 8]
    else:                                                 # v7x (64 MiB per TensorCore)
        cand = [256, 128, 64, 32, 16, 8]

    tm = None
    for c in cand:
        c = min(int(c), n_pad)
        if c < 8 or c % 8 or n_pad % c:
            continue
        if resident + step_bytes(c) <= vmem_budget:
            tm = c
            break
    if tm is None:
        # TODO(synk): stream Np in column blocks with a running top-P carry when the
        # resident (Dp, Np) embeddings do not fit the per-core VMEM (large N*D on v7x).
        raise ValueError("HardDarkRank problem too large for the resident-RHS kernel "
                         f"(need ~{resident + step_bytes(8)} B, budget {vmem_budget} B)")
    # Keep >= 2 grid steps so the 'parallel' axis can shard across TensorCores
    # (v7x megacore); negligible cost on single-core chips at these sizes.
    if n_pad // tm < 2 and tm > 8:
        tm = tm // 2
    return tm


def hard_darkrank_loss(student, teacher, alpha=2, beta=3, permute_len=3, eps=1e-12,
                       block_rows=None):
    assert student.shape == teacher.shape and student.ndim == 2
    n, d = student.shape
    p = int(permute_len)
    if not (1 <= p <= n - 1):
        raise ValueError(f"permute_len must be in [1, N-1]; got {p} for N={n}")

    n_pad = _round_up(max(n, 8), 128)      # lane axis of the score slabs
    d_pad = _round_up(max(d, 1), 128)      # MXU contraction dim

    # Per-core VMEM budget with headroom (v5e/v6e: 128 MiB, v7x: 64 MiB per TC).
    try:
        vmem_cap = int(pltpu.get_tpu_info().vmem_capacity_bytes)
    except Exception:
        vmem_cap = 128 * 1024 * 1024
    vmem_limit = int(0.8 * vmem_cap)

    tm = _choose_tm(n_pad, d_pad, vmem_limit, block_rows)
    grid = n_pad // tm

    s = jnp.zeros((n_pad, d_pad), jnp.float32).at[:n, :d].set(student.astype(jnp.float32))
    t = jnp.zeros((n_pad, d_pad), jnp.float32).at[:n, :d].set(teacher.astype(jnp.float32))
    # One HBM transpose each (outside the kernel, once) so the in-kernel matmuls
    # are standard (M, K) x (K, N) against a lane-dense resident RHS.
    s_T = jnp.transpose(s)                                    # (Dp, Np)
    t_T = jnp.transpose(t)                                    # (Dp, Np)
    sq_s = jnp.sum(s * s, axis=1)                             # (Np,)  pad rows are 0
    sq_t = jnp.sum(t * t, axis=1)
    sq_s_col, sq_s_row = sq_s[:, None], sq_s[None, :]
    sq_t_col, sq_t_row = sq_t[:, None], sq_t[None, :]

    kernel = functools.partial(
        _hard_darkrank_kernel,
        n=int(n), tm=int(tm), n_pad=int(n_pad),
        alpha=float(alpha), beta=beta, permute_len=p, eps=float(eps))

    cost = pl.CostEstimate(
        flops=int(4 * n_pad * n_pad * d_pad + (6 * p + 10) * n_pad * n_pad),
        transcendentals=int(4 * p * n_pad),
        bytes_accessed=int(4 * n_pad * d_pad * 4 + 6 * n_pad * 4 + grid * 8 * 128 * 4))

    partials = pl.pallas_call(
        kernel,
        out_shape=jax.ShapeDtypeStruct((grid, 8, 128), jnp.float32),
        grid_spec=pltpu.PrefetchScalarGridSpec(
            num_scalar_prefetch=0,
            grid=(grid,),
            in_specs=[
                pl.BlockSpec((tm, d_pad), lambda i: (i, 0)),   # student LHS row tile
                pl.BlockSpec((tm, d_pad), lambda i: (i, 0)),   # teacher LHS row tile
                pl.BlockSpec((tm, 1), lambda i: (i, 0)),       # |student_i|^2 column tile
                pl.BlockSpec((tm, 1), lambda i: (i, 0)),       # |teacher_i|^2 column tile
                _resident_spec((d_pad, n_pad)),                # student^T RHS (resident, 1-buffered)
                _resident_spec((d_pad, n_pad)),                # teacher^T RHS (resident, 1-buffered)
                _resident_spec((1, n_pad)),                    # |student_j|^2 row (resident)
                _resident_spec((1, n_pad)),                    # |teacher_j|^2 row (resident)
            ],
            out_specs=pl.BlockSpec((1, 8, 128), lambda i: (i, 0, 0)),
        ),
        compiler_params=pltpu.CompilerParams(
            dimension_semantics=("parallel",),                 # row tiles are independent
            vmem_limit_bytes=vmem_limit,
        ),
        cost_estimate=cost,
    )(s, t, sq_s_col, sq_t_col, s_T, t_T, sq_s_row, sq_t_row)

    return jnp.sum(partials[:, 0, 0]) / jnp.float32(n)


# ---- pure-JAX reference (for correctness check only) ----
def _pdist_ref(e, eps=1e-12):
    sq = jnp.sum(e ** 2, axis=1)
    prod = e @ e.T
    res = jnp.sqrt(jnp.clip(sq[:, None] + sq[None, :] - 2.0 * prod, min=eps))
    n = e.shape[0]
    return res.at[jnp.arange(n), jnp.arange(n)].set(0.0)


def hard_darkrank_ref(student, teacher, alpha=2, beta=3, permute_len=3):
    sc_t = -1.0 * alpha * _pdist_ref(teacher) ** beta
    sc_s = -1.0 * alpha * _pdist_ref(student) ** beta
    idx = jnp.argsort(-sc_t, axis=1)[:, 1:permute_len + 1]
    ordered = jnp.take_along_axis(sc_s, idx, axis=1)

    def lse(x):
        m = jnp.max(x, axis=1)
        return m + jnp.log(jnp.sum(jnp.exp(x - m[:, None]), axis=1))

    lses = jnp.stack([lse(ordered[:, i:]) for i in range(permute_len)], axis=1)
    log_prob = jnp.sum(ordered - lses, axis=1)
    return jnp.mean(-log_prob)


if __name__ == "__main__":
    # Test 1: tiny shape (batch of 8 embeddings, hidden dim 32).
    ks, kt = jax.random.split(jax.random.PRNGKey(0))
    student = jax.random.normal(ks, (8, 32), dtype=jnp.float32)
    teacher = jax.random.normal(kt, (8, 32), dtype=jnp.float32)
    loss = jax.block_until_ready(jax.jit(hard_darkrank_loss)(student, teacher))
    ref = hard_darkrank_ref(student, teacher)
    assert jnp.abs(loss - ref) < 1e-3 * (1.0 + jnp.abs(ref)), (loss, ref)

    # Test 2: exercises row tiling (grid > 1), lane/feature padding and the
    # pad-row / pad-column masking (N=200 -> Np=256, D=48 -> 128).
    k2s, k2t = jax.random.split(jax.random.PRNGKey(1))
    student2 = jax.random.normal(k2s, (200, 48), dtype=jnp.float32)
    teacher2 = jax.random.normal(k2t, (200, 48), dtype=jnp.float32)
    loss2 = jax.block_until_ready(jax.jit(hard_darkrank_loss)(student2, teacher2))
    ref2 = hard_darkrank_ref(student2, teacher2)
    assert jnp.abs(loss2 - ref2) < 2e-2 * (1.0 + jnp.abs(ref2)), (loss2, ref2)

    print("KERNEL_OK")
</pallas_src>

<mosaic_0001>
module attributes {stable_mosaic.version = 11 : i64} {
  func.func @_hard_darkrank_kernel(%arg0: i32, %arg1: memref<64x128xf32, #tpu.memory_space<vmem>>, %arg2: memref<64x128xf32, #tpu.memory_space<vmem>>, %arg3: memref<64x1xf32, #tpu.memory_space<vmem>>, %arg4: memref<64x1xf32, #tpu.memory_space<vmem>>, %arg5: memref<128x128xf32, #tpu.memory_space<vmem>>, %arg6: memref<128x128xf32, #tpu.memory_space<vmem>>, %arg7: memref<1x128xf32, #tpu.memory_space<vmem>>, %arg8: memref<1x128xf32, #tpu.memory_space<vmem>>, %arg9: memref<1x8x128xf32, #tpu.memory_space<vmem>>) attributes {dimension_semantics = [#tpu.dimension_semantics<parallel>], iteration_bounds = array<i64: 2>, scalar_prefetch = 0 : i64, scratch_operands = 0 : i64, tpu.core_type = #tpu.core_type<tc>, window_params = [{transform_indices = @transform_0, window_bounds = array<i64: 64, 128>}, {transform_indices = @transform_1, window_bounds = array<i64: 64, 128>}, {transform_indices = @transform_2, window_bounds = array<i64: 64, 1>}, {transform_indices = @transform_3, window_bounds = array<i64: 64, 1>}, {pipeline_mode = #tpu.pipeline_mode<synchronous>, transform_indices = @transform_4, window_bounds = array<i64: 128, 128>}, {pipeline_mode = #tpu.pipeline_mode<synchronous>, transform_indices = @transform_5, window_bounds = array<i64: 128, 128>}, {pipeline_mode = #tpu.pipeline_mode<synchronous>, transform_indices = @transform_6, window_bounds = array<i64: 1, 128>}, {pipeline_mode = #tpu.pipeline_mode<synchronous>, transform_indices = @transform_7, window_bounds = array<i64: 1, 128>}, {transform_indices = @transform_8, window_bounds = array<i64: 1, 8, 128>}]} {
    %c64_i32 = arith.constant 64 : i32
    %0 = arith.muli %arg0, %c64_i32 : i32
    %c0 = arith.constant 0 : index
    %c0_0 = arith.constant 0 : index
    %1 = vector.load %arg2[%c0, %c0_0] : memref<64x128xf32, #tpu.memory_space<vmem>>, vector<64x128xf32>
    %c0_1 = arith.constant 0 : index
    %c0_2 = arith.constant 0 : index
    %2 = vector.load %arg6[%c0_1, %c0_2] : memref<128x128xf32, #tpu.memory_space<vmem>>, vector<128x128xf32>
    %cst = arith.constant dense<0.000000e+00> : vector<64x128xf32>
    %3 = tpu.matmul %1, %2, %cst {dimension_numbers = #tpu.dot_dimension_numbers<[1], [0], [0], [1], [0, 0, 1, 1], [], []>} : vector<64x128xf32>, vector<128x128xf32>, vector<64x128xf32> -> vector<64x128xf32>
    %c0_3 = arith.constant 0 : index
    %c0_4 = arith.constant 0 : index
    %4 = vector.load %arg1[%c0_3, %c0_4] : memref<64x128xf32, #tpu.memory_space<vmem>>, vector<64x128xf32>
    %c0_5 = arith.constant 0 : index
    %c0_6 = arith.constant 0 : index
    %5 = vector.load %arg5[%c0_5, %c0_6] : memref<128x128xf32, #tpu.memory_space<vmem>>, vector<128x128xf32>
    %cst_7 = arith.constant dense<0.000000e+00> : vector<64x128xf32>
    %6 = tpu.matmul %4, %5, %cst_7 {dimension_numbers = #tpu.dot_dimension_numbers<[1], [0], [0], [1], [0, 0, 1, 1], [], []>} : vector<64x128xf32>, vector<128x128xf32>, vector<64x128xf32> -> vector<64x128xf32>
    %c0_8 = arith.constant 0 : index
    %c0_9 = arith.constant 0 : index
    %7 = vector.load %arg4[%c0_8, %c0_9] : memref<64x1xf32, #tpu.memory_space<vmem>>, vector<64x1xf32>
    %c0_10 = arith.constant 0 : index
    %c0_11 = arith.constant 0 : index
    %8 = vector.load %arg8[%c0_10, %c0_11] : memref<1x128xf32, #tpu.memory_space<vmem>>, vector<1x128xf32>
    %9 = vector.broadcast %7 : vector<64x1xf32> to vector<64x128xf32>
    %10 = vector.broadcast %8 : vector<1x128xf32> to vector<64x128xf32>
    %11 = arith.addf %9, %10 : vector<64x128xf32>
    %cst_12 = arith.constant 2.000000e+00 : f32
    %12 = vector.broadcast %cst_12 : f32 to vector<64x128xf32>
    %13 = arith.mulf %12, %3 : vector<64x128xf32>
    %14 = arith.subf %11, %13 : vector<64x128xf32>
    %cst_13 = arith.constant 9.99999996E-13 : f32
    %15 = vector.broadcast %cst_13 : f32 to vector<64x128xf32>
    %16 = arith.maximumf %14, %15 : vector<64x128xf32>
    %c0_14 = arith.constant 0 : index
    %c0_15 = arith.constant 0 : index
    %17 = vector.load %arg3[%c0_14, %c0_15] : memref<64x1xf32, #tpu.memory_space<vmem>>, vector<64x1xf32>
    %c0_16 = arith.constant 0 : index
    %c0_17 = arith.constant 0 : index
    %18 = vector.load %arg7[%c0_16, %c0_17] : memref<1x128xf32, #tpu.memory_space<vmem>>, vector<1x128xf32>
    %19 = vector.broadcast %17 : vector<64x1xf32> to vector<64x128xf32>
    %20 = vector.broadcast %18 : vector<1x128xf32> to vector<64x128xf32>
    %21 = arith.addf %19, %20 : vector<64x128xf32>
    %cst_18 = arith.constant 2.000000e+00 : f32
    %22 = vector.broadcast %cst_18 : f32 to vector<64x128xf32>
    %23 = arith.mulf %22, %6 : vector<64x128xf32>
    %24 = arith.subf %21, %23 : vector<64x128xf32>
    %cst_19 = arith.constant 9.99999996E-13 : f32
    %25 = vector.broadcast %cst_19 : f32 to vector<64x128xf32>
    %26 = arith.maximumf %24, %25 : vector<64x128xf32>
    %27 = tpu.iota {dimensions = array<i32: 1>} : vector<64x128xi32>
    %28 = tpu.iota {dimensions = array<i32: 0>} : vector<64x128xi32>
    %29 = vector.broadcast %0 : i32 to vector<64x128xi32>
    %30 = arith.addi %28, %29 : vector<64x128xi32>
    %31 = arith.cmpi eq, %27, %30 : vector<64x128xi32>
    %c8_i32 = arith.constant 8 : i32
    %32 = vector.broadcast %c8_i32 : i32 to vector<64x128xi32>
    %33 = arith.cmpi sge, %27, %32 : vector<64x128xi32>
    %34 = arith.ori %31, %33 : vector<64x128xi1>
    %cst_20 = arith.constant 3.000000e+38 : f32
    %35 = vector.broadcast %cst_20 : f32 to vector<64x128xf32>
    %36 = arith.select %34, %35, %16 : vector<64x128xi1>, vector<64x128xf32>
    %cst_21 = arith.constant dense<0x7F800000> : vector<64xf32>
    %37 = vector.multi_reduction <minimumf>, %36, %cst_21 [1] : vector<64x128xf32> to vector<64xf32>
    %38 = vector.shape_cast %37 : vector<64xf32> to vector<64x1xf32>
    %39 = vector.broadcast %38 : vector<64x1xf32> to vector<64x128xf32>
    %40 = arith.cmpf oeq, %36, %39 : vector<64x128xf32>
    %c128_i32 = arith.constant 128 : i32
    %41 = vector.broadcast %c128_i32 : i32 to vector<64x128xi32>
    %42 = arith.select %40, %27, %41 : vector<64x128xi1>, vector<64x128xi32>
    %cst_22 = arith.constant dense<2147483647> : vector<64xi32>
    %43 = vector.multi_reduction <minsi>, %42, %cst_22 [1] : vector<64x128xi32> to vector<64xi32>
    %44 = vector.shape_cast %43 : vector<64xi32> to vector<64x1xi32>
    %45 = vector.broadcast %44 : vector<64x1xi32> to vector<64x128xi32>
    %46 = arith.cmpi eq, %27, %45 : vector<64x128xi32>
    %cst_23 = arith.constant 0.000000e+00 : f32
    %47 = vector.broadcast %cst_23 : f32 to vector<64x128xf32>
    %48 = arith.select %46, %26, %47 : vector<64x128xi1>, vector<64x128xf32>
    %cst_24 = arith.constant dense<0.000000e+00> : vector<64xf32>
    %49 = vector.multi_reduction <add>, %48, %cst_24 [1] : vector<64x128xf32> to vector<64xf32>
    %50 = vector.shape_cast %49 : vector<64xf32> to vector<64x1xf32>
    %cst_25 = arith.constant 3.000000e+38 : f32
    %51 = vector.broadcast %cst_25 : f32 to vector<64x128xf32>
    %52 = arith.select %46, %51, %36 : vector<64x128xi1>, vector<64x128xf32>
    %cst_26 = arith.constant dense<0x7F800000> : vector<64xf32>
    %53 = vector.multi_reduction <minimumf>, %52, %cst_26 [1] : vector<64x128xf32> to vector<64xf32>
    %54 = vector.shape_cast %53 : vector<64xf32> to vector<64x1xf32>
    %55 = vector.broadcast %54 : vector<64x1xf32> to vector<64x128xf32>
    %56 = arith.cmpf oeq, %52, %55 : vector<64x128xf32>
    %c128_i32_27 = arith.constant 128 : i32
    %57 = vector.broadcast %c128_i32_27 : i32 to vector<64x128xi32>
    %58 = arith.select %56, %27, %57 : vector<64x128xi1>, vector<64x128xi32>
    %cst_28 = arith.constant dense<2147483647> : vector<64xi32>
    %59 = vector.multi_reduction <minsi>, %58, %cst_28 [1] : vector<64x128xi32> to vector<64xi32>
    %60 = vector.shape_cast %59 : vector<64xi32> to vector<64x1xi32>
    %61 = vector.broadcast %60 : vector<64x1xi32> to vector<64x128xi32>
    %62 = arith.cmpi eq, %27, %61 : vector<64x128xi32>
    %cst_29 = arith.constant 0.000000e+00 : f32
    %63 = vector.broadcast %cst_29 : f32 to vector<64x128xf32>
    %64 = arith.select %62, %26, %63 : vector<64x128xi1>, vector<64x128xf32>
    %cst_30 = arith.constant dense<0.000000e+00> : vector<64xf32>
    %65 = vector.multi_reduction <add>, %64, %cst_30 [1] : vector<64x128xf32> to vector<64xf32>
    %66 = vector.shape_cast %65 : vector<64xf32> to vector<64x1xf32>
    %cst_31 = arith.constant 3.000000e+38 : f32
    %67 = vector.broadcast %cst_31 : f32 to vector<64x128xf32>
    %68 = arith.select %62, %67, %52 : vector<64x128xi1>, vector<64x128xf32>
    %cst_32 = arith.constant dense<0x7F800000> : vector<64xf32>
    %69 = vector.multi_reduction <minimumf>, %68, %cst_32 [1] : vector<64x128xf32> to vector<64xf32>
    %70 = vector.shape_cast %69 : vector<64xf32> to vector<64x1xf32>
    %71 = vector.broadcast %70 : vector<64x1xf32> to vector<64x128xf32>
    %72 = arith.cmpf oeq, %68, %71 : vector<64x128xf32>
    %c128_i32_33 = arith.constant 128 : i32
    %73 = vector.broadcast %c128_i32_33 : i32 to vector<64x128xi32>
    %74 = arith.select %72, %27, %73 : vector<64x128xi1>, vector<64x128xi32>
    %cst_34 = arith.constant dense<2147483647> : vector<64xi32>
    %75 = vector.multi_reduction <minsi>, %74, %cst_34 [1] : vector<64x128xi32> to vector<64xi32>
    %76 = vector.shape_cast %75 : vector<64xi32> to vector<64x1xi32>
    %77 = vector.broadcast %76 : vector<64x1xi32> to vector<64x128xi32>
    %78 = arith.cmpi eq, %27, %77 : vector<64x128xi32>
    %cst_35 = arith.constant 0.000000e+00 : f32
    %79 = vector.broadcast %cst_35 : f32 to vector<64x128xf32>
    %80 = arith.select %78, %26, %79 : vector<64x128xi1>, vector<64x128xf32>
    %cst_36 = arith.constant dense<0.000000e+00> : vector<64xf32>
    %81 = vector.multi_reduction <add>, %80, %cst_36 [1] : vector<64x128xf32> to vector<64xf32>
    %82 = vector.shape_cast %81 : vector<64xf32> to vector<64x1xf32>
    %83 = math.sqrt %50 : vector<64x1xf32>
    %84 = arith.mulf %83, %83 : vector<64x1xf32>
    %85 = arith.mulf %83, %84 : vector<64x1xf32>
    %cst_37 = arith.constant -2.000000e+00 : f32
    %86 = vector.broadcast %cst_37 : f32 to vector<64x1xf32>
    %87 = arith.mulf %86, %85 : vector<64x1xf32>
    %88 = math.sqrt %66 : vector<64x1xf32>
    %89 = arith.mulf %88, %88 : vector<64x1xf32>
    %90 = arith.mulf %88, %89 : vector<64x1xf32>
    %cst_38 = arith.constant -2.000000e+00 : f32
    %91 = vector.broadcast %cst_38 : f32 to vector<64x1xf32>
    %92 = arith.mulf %91, %90 : vector<64x1xf32>
    %93 = math.sqrt %82 : vector<64x1xf32>
    %94 = arith.mulf %93, %93 : vector<64x1xf32>
    %95 = arith.mulf %93, %94 : vector<64x1xf32>
    %cst_39 = arith.constant -2.000000e+00 : f32
    %96 = vector.broadcast %cst_39 : f32 to vector<64x1xf32>
    %97 = arith.mulf %96, %95 : vector<64x1xf32>
    %cst_40 = arith.constant 0.000000e+00 : f32
    %98 = vector.broadcast %cst_40 : f32 to vector<64x1xf32>
    %99 = arith.maximumf %92, %97 : vector<64x1xf32>
    %100 = arith.subf %92, %99 : vector<64x1xf32>
    %101 = math.exp %100 : vector<64x1xf32>
    %102 = arith.subf %97, %99 : vector<64x1xf32>
    %103 = math.exp %102 : vector<64x1xf32>
    %104 = arith.addf %101, %103 : vector<64x1xf32>
    %105 = math.log %104 : vector<64x1xf32>
    %106 = arith.addf %99, %105 : vector<64x1xf32>
    %107 = arith.subf %92, %106 : vector<64x1xf32>
    %108 = arith.addf %98, %107 : vector<64x1xf32>
    %109 = arith.maximumf %87, %106 : vector<64x1xf32>
    %110 = arith.subf %87, %109 : vector<64x1xf32>
    %111 = math.exp %110 : vector<64x1xf32>
    %112 = arith.subf %106, %109 : vector<64x1xf32>
    %113 = math.exp %112 : vector<64x1xf32>
    %114 = arith.addf %111, %113 : vector<64x1xf32>
    %115 = math.log %114 : vector<64x1xf32>
    %116 = arith.addf %109, %115 : vector<64x1xf32>
    %117 = arith.subf %87, %116 : vector<64x1xf32>
    %118 = arith.addf %108, %117 : vector<64x1xf32>
    %119 = tpu.iota {dimensions = array<i32: 0>} : vector<64x1xi32>
    %120 = vector.broadcast %0 : i32 to vector<64x1xi32>
    %121 = arith.addi %119, %120 : vector<64x1xi32>
    %c8_i32_41 = arith.constant 8 : i32
    %122 = vector.broadcast %c8_i32_41 : i32 to vector<64x1xi32>
    %123 = arith.cmpi slt, %121, %122 : vector<64x1xi32>
    %cst_42 = arith.constant 0.000000e+00 : f32
    %124 = vector.broadcast %cst_42 : f32 to vector<64x1xf32>
    %125 = arith.subf %124, %118 : vector<64x1xf32>
    %cst_43 = arith.constant 0.000000e+00 : f32
    %126 = vector.broadcast %cst_43 : f32 to vector<64x1xf32>
    %127 = arith.select %123, %125, %126 : vector<64x1xi1>, vector<64x1xf32>
    %128 = vector.shape_cast %127 : vector<64x1xf32> to vector<1x64x1xf32>
    %cst_44 = arith.constant dense<0.000000e+00> : vector<1xf32>
    %129 = vector.multi_reduction <add>, %128, %cst_44 [1, 2] : vector<1x64x1xf32> to vector<1xf32>
    %130 = vector.shape_cast %129 : vector<1xf32> to vector<1x1x1xf32>
    %131 = vector.extract %130[0, 0, 0] : f32 from vector<1x1x1xf32>
    %132 = vector.broadcast %131 : f32 to vector<1x8x128xf32>
    %c0_45 = arith.constant 0 : index
    %c0_46 = arith.constant 0 : index
    %c0_47 = arith.constant 0 : index
    %133 = vector.load %arg9[%c0_45, %c0_46, %c0_47] : memref<1x8x128xf32, #tpu.memory_space<vmem>>, vector<1x8x128xf32>
    tpu.vector_store %arg9[%c0_45, %c0_46, %c0_47], %132 {strides = array<i32>} : memref<1x8x128xf32, #tpu.memory_space<vmem>>, vector<1x8x128xf32>,
    return
  }
  func.func @transform_0(%arg0: i32) -> (i32, i32) {
    %c0_i32 = arith.constant 0 : i32
    %c0_i32_0 = arith.constant 0 : i32
    return %arg0, %c0_i32 : i32, i32
  }
  func.func @transform_1(%arg0: i32) -> (i32, i32) {
    %c0_i32 = arith.constant 0 : i32
    %c0_i32_0 = arith.constant 0 : i32
    return %arg0, %c0_i32 : i32, i32
  }
  func.func @transform_2(%arg0: i32) -> (i32, i32) {
    %c0_i32 = arith.constant 0 : i32
    %c0_i32_0 = arith.constant 0 : i32
    return %arg0, %c0_i32 : i32, i32
  }
  func.func @transform_3(%arg0: i32) -> (i32, i32) {
    %c0_i32 = arith.constant 0 : i32
    %c0_i32_0 = arith.constant 0 : i32
    return %arg0, %c0_i32 : i32, i32
  }
  func.func @transform_4(%arg0: i32) -> (i32, i32) {
    %c0_i32 = arith.constant 0 : i32
    %c0_i32_0 = arith.constant 0 : i32
    %c0_i32_1 = arith.constant 0 : i32
    return %c0_i32, %c0_i32_0 : i32, i32
  }
  func.func @transform_5(%arg0: i32) -> (i32, i32) {
    %c0_i32 = arith.constant 0 : i32
    %c0_i32_0 = arith.constant 0 : i32
    %c0_i32_1 = arith.constant 0 : i32
    return %c0_i32, %c0_i32_0 : i32, i32
  }
  func.func @transform_6(%arg0: i32) -> (i32, i32) {
    %c0_i32 = arith.constant 0 : i32
    %c0_i32_0 = arith.constant 0 : i32
    %c0_i32_1 = arith.constant 0 : i32
    return %c0_i32, %c0_i32_0 : i32, i32
  }
  func.func @transform_7(%arg0: i32) -> (i32, i32) {
    %c0_i32 = arith.constant 0 : i32
    %c0_i32_0 = arith.constant 0 : i32
    %c0_i32_1 = arith.constant 0 : i32
    return %c0_i32, %c0_i32_0 : i32, i32
  }
  func.func @transform_8(%arg0: i32) -> (i32, i32, i32) {
    %c0_i32 = arith.constant 0 : i32
    %c0_i32_0 = arith.constant 0 : i32
    %c0_i32_1 = arith.constant 0 : i32
    return %arg0, %c0_i32, %c0_i32_0 : i32, i32, i32
  }
}

</mosaic_0001>

<llo_original>
// kernel: hard_darkrank_loss.1
$region0: #{hard_darkrank_loss.1}
  #allocation0 [shape = 'u32[]', space=smem, size = 0x4, offset = 0x4, fixed_abs, tag = 'smem constant byte address 0x4 - core index']
  #allocation1 [shape = 'u32[144,128]{1,0:T(1,128)}', space=vmem, size = 0x12000, scoped, tag = 'internal scratch']
  %s0 = inlined_call_operand.hbm [shape: f32[128,128], index: 0, kind: input, shape index: {}]
  %s1 = inlined_call_operand.hbm [shape: f32[128,128], index: 1, kind: input, shape index: {}]
  %s2 = inlined_call_operand.hbm [shape: f32[128,1], index: 2, kind: input, shape index: {}]
  %s3 = inlined_call_operand.hbm [shape: f32[128,1], index: 3, kind: input, shape index: {}]
  %s4 = inlined_call_operand.hbm [shape: f32[128,128], index: 4, kind: input, shape index: {}]
  %s5 = inlined_call_operand.hbm [shape: f32[128,128], index: 5, kind: input, shape index: {}]
  %s6 = inlined_call_operand.hbm [shape: f32[1,128], index: 6, kind: input, shape index: {}]
  %s7 = inlined_call_operand.hbm [shape: f32[1,128], index: 7, kind: input, shape index: {}]
  %s8 = inlined_call_operand.hbm [shape: f32[2,8,128], index: 8, kind: output, shape index: {}]
  %s9 = sld [smem:[#allocation0]]
  $region97: #{hard_darkrank_loss.1} parent=0
    _
  %s11 = ssub.s32 1, %s9
  %s12 = scalar_select 0, %s11, %s9
  $region1: #{hard_darkrank_loss.1} parent=0
    #allocation2 [shape = 'u8[65536]{0}', space=vmem, size = 0x10000, scoped, tag = 'input window, operand 0']
    #allocation3 [shape = 's32[2]{0}', space=sflag, size = 0x8, scoped, tag = 'scoped memory for hard_darkrank_loss.1']
    #allocation4 [shape = 's32[2]{0}', space=sflag, size = 0x8, scoped, tag = 'scoped memory for hard_darkrank_loss.1']
    #allocation5 [shape = 'u8[65536]{0}', space=vmem, size = 0x10000, scoped, tag = 'input window, operand 1']
    #allocation6 [shape = 's32[2]{0}', space=sflag, size = 0x8, scoped, tag = 'scoped memory for hard_darkrank_loss.1']
    #allocation7 [shape = 'u8[65536]{0}', space=vmem, size = 0x10000, scoped, tag = 'input window, operand 2']
    #allocation8 [shape = 'u8[65536]{0}', space=vmem, size = 0x10000, scoped, tag = 'input window, operand 3']
    #allocation9 [shape = 's32[2]{0}', space=sflag, size = 0x8, scoped, tag = 'scoped memory for hard_darkrank_loss.1']
    #allocation10 [shape = 'u8[65536]{0}', space=vmem, size = 0x10000, scoped, tag = 'input window, operand 4, single buffered']
    #allocation11 [shape = 'u8[65536]{0}', space=vmem, size = 0x10000, scoped, tag = 'input window, operand 5, single buffered']
    #allocation12 [shape = 's32[1]{0}', space=sflag, size = 0x4, scoped, tag = 'scoped memory for hard_darkrank_loss.1']
    #allocation13 [shape = 'u8[512]{0}', space=vmem, size = 0x400, scoped, tag = 'input window, operand 6, single buffered']
    #allocation14 [shape = 'u8[512]{0}', space=vmem, size = 0x400, scoped, tag = 'input window, operand 7, single buffered']
    #allocation15 [shape = 's32[1]{0}', space=sflag, size = 0x4, scoped, tag = 'scoped memory for hard_darkrank_loss.1']
    #allocation16 [shape = 'u8[8192]{0}', space=vmem, size = 0x2000, scoped, tag = 'output window, operand 0']
    %13 = vsyncpa [#allocation3], 0
    %s14 = scalar_lea.sflag [#allocation3], 1
    %15 = vsyncpa %s14, 0
    %16 = vsyncpa [#allocation6], 0
    %s17 = scalar_lea.sflag [#allocation6], 1
    %18 = vsyncpa %s17, 0
    %19 = vsyncpa [#allocation9], 0
    %s20 = scalar_lea.sflag [#allocation9], 1
    %21 = vsyncpa %s20, 0
    %22 = vsyncpa [#allocation12], 0
    %23 = vsyncpa [#allocation15], 0
    %24 = vsyncpa [#allocation4], 0
    %s25 = scalar_lea.sflag [#allocation4], 1
    %26 = vsyncpa %s25, 0
    loop: start=0, step=1, limit=4
    $region2: #{hard_darkrank_loss.1} parent=1 // loop_pre_header
      _
    $region3: #{hard_darkrank_loss.1} parent=1 // loop_header
      %s28 = sphi 0, %s32
      %p29 = scmp.ge.s32.totalorder %s28, 4
      %s38 = sphi 0, %s40
      %s41 = sphi 0, %s38
      %s42 = sphi 0, %s41
      %s58 = sphi 0, %s42
      %s64 = sphi 0, %s66
      %s67 = sphi 0, %s64
      %s68 = sphi 0, %s67
      %s84 = sphi 0, %s68
      %s90 = sphi 0, %s92
      %s93 = sphi 0, %s90
      %s94 = sphi 0, %s93
      %s110 = sphi 0, %s94
      %s116 = sphi 0, %s118
      %s119 = sphi 0, %s116
      %s120 = sphi 0, %s119
      %s136 = sphi 0, %s120
      %s140 = sphi 0, %s140
      %s142 = sphi 0, %s140
      %s143 = sphi 0, %s142
      %s157 = sphi 0, %s143
      %s161 = sphi 0, %s161
      %s163 = sphi 0, %s161
      %s164 = sphi 0, %s163
      %s178 = sphi 0, %s164
      %s182 = sphi 0, %s182
      %s184 = sphi 0, %s182
      %s185 = sphi 0, %s184
      %s199 = sphi 0, %s185
      %s203 = sphi 0, %s203
      %s205 = sphi 0, %s203
      %s206 = sphi 0, %s205
      %s220 = sphi 0, %s206
      %s226 = sphi 0, %s228
      %s229 = sphi 0, %s226
      %s230 = sphi 0, %s229
      %s246 = sphi 0, %s230
    $region4: #{hard_darkrank_loss.1} parent=1 // loop_header_branch
      %31 = sbr.rel (%p29) target = $region8
    $region5: #{hard_darkrank_loss.1} parent=1 // loop_body
      %s33 = ssub.s32 %s28, 1
      %s34 = ssub.s32 %s28, 2
      %s35 = sadd.s32 %s28, 1
      %s36 = ssub.s32 %s28, %s35
      %p37 = scmp.eq.s32.totalorder %s36, 0
      %s39 = sadd.s32 %s38, 1
      %s40 = scalar_select %p37, %s38, %s39
      %p43 = pneg %p37
      %p44 = scmp.eq.s32.totalorder %s28, 1
      %p45 = por %p43, %p44
      %p46 = scmp.ne.s32.totalorder %s38, %s41
      %p47 = scmp.eq.s32.totalorder %s28, 0
      %p48 = por %p46, %p47
      %p49 = scmp.ne.s32.totalorder %s38, %s41
      %p50 = scmp.eq.s32.totalorder %s33, 1
      %p51 = por %p49, %p50
      %p52 = scmp.ne.s32.totalorder %s41, %s42
      %p53 = scmp.eq.s32.totalorder %s33, 0
      %p54 = por %p52, %p53
      %p55 = scmp.ne.s32.totalorder %s41, %s42
      %p56 = scmp.eq.s32.totalorder %s34, 1
      %p57 = por %p55, %p56
      %p59 = scmp.ne.s32.totalorder %s42, %s58
      %p60 = scmp.eq.s32.totalorder %s34, 0
      %p61 = por %p59, %p60
      %s62 = ssub.s32 %s28, %s35
      %p63 = scmp.eq.s32.totalorder %s62, 0
      %s65 = sadd.s32 %s64, 1
      %s66 = scalar_select %p63, %s64, %s65
      %p69 = pneg %p63
      %p70 = scmp.eq.s32.totalorder %s28, 1
      %p71 = por %p69, %p70
      %p72 = scmp.ne.s32.totalorder %s64, %s67
      %p73 = scmp.eq.s32.totalorder %s28, 0
      %p74 = por %p72, %p73
      %p75 = scmp.ne.s32.totalorder %s64, %s67
      %p76 = scmp.eq.s32.totalorder %s33, 1
      %p77 = por %p75, %p76
      %p78 = scmp.ne.s32.totalorder %s67, %s68
      %p79 = scmp.eq.s32.totalorder %s33, 0
      %p80 = por %p78, %p79
      %p81 = scmp.ne.s32.totalorder %s67, %s68
      %p82 = scmp.eq.s32.totalorder %s34, 1
      %p83 = por %p81, %p82
      %p85 = scmp.ne.s32.totalorder %s68, %s84
      %p86 = scmp.eq.s32.totalorder %s34, 0
      %p87 = por %p85, %p86
      %s88 = ssub.s32 %s28, %s35
      %p89 = scmp.eq.s32.totalorder %s88, 0
      %s91 = sadd.s32 %s90, 1
      %s92 = scalar_select %p89, %s90, %s91
      %p95 = pneg %p89
      %p96 = scmp.eq.s32.totalorder %s28, 1
      %p97 = por %p95, %p96
      %p98 = scmp.ne.s32.totalorder %s90, %s93
      %p99 = scmp.eq.s32.totalorder %s28, 0
      %p100 = por %p98, %p99
      %p101 = scmp.ne.s32.totalorder %s90, %s93
      %p102 = scmp.eq.s32.totalorder %s33, 1
      %p103 = por %p101, %p102
      %p104 = scmp.ne.s32.totalorder %s93, %s94
      %p105 = scmp.eq.s32.totalorder %s33, 0
      %p106 = por %p104, %p105
      %p107 = scmp.ne.s32.totalorder %s93, %s94
      %p108 = scmp.eq.s32.totalorder %s34, 1
      %p109 = por %p107, %p108
      %p111 = scmp.ne.s32.totalorder %s94, %s110
      %p112 = scmp.eq.s32.totalorder %s34, 0
      %p113 = por %p111, %p112
      %s114 = ssub.s32 %s28, %s35
      %p115 = scmp.eq.s32.totalorder %s114, 0
      %s117 = sadd.s32 %s116, 1
      %s118 = scalar_select %p115, %s116, %s117
      %p121 = pneg %p115
      %p122 = scmp.eq.s32.totalorder %s28, 1
      %p123 = por %p121, %p122
      %p124 = scmp.ne.s32.totalorder %s116, %s119
      %p125 = scmp.eq.s32.totalorder %s28, 0
      %p126 = por %p124, %p125
      %p127 = scmp.ne.s32.totalorder %s116, %s119
      %p128 = scmp.eq.s32.totalorder %s33, 1
      %p129 = por %p127, %p128
      %p130 = scmp.ne.s32.totalorder %s119, %s120
      %p131 = scmp.eq.s32.totalorder %s33, 0
      %p132 = por %p130, %p131
      %p133 = scmp.ne.s32.totalorder %s119, %s120
      %p134 = scmp.eq.s32.totalorder %s34, 1
      %p135 = por %p133, %p134
      %p137 = scmp.ne.s32.totalorder %s120, %s136
      %p138 = scmp.eq.s32.totalorder %s34, 0
      %p139 = por %p137, %p138
      %s141 = sadd.s32 %s140, 1
      %p144 = scmp.eq.s32.totalorder %s28, 1
      %p145 = scmp.ne.s32.totalorder %s140, %s142
      %p146 = scmp.eq.s32.totalorder %s28, 0
      %p147 = por %p145, %p146
      %p148 = scmp.ne.s32.totalorder %s140, %s142
      %p149 = scmp.eq.s32.totalorder %s33, 1
      %p150 = por %p148, %p149
      %p151 = scmp.ne.s32.totalorder %s142, %s143
      %p152 = scmp.eq.s32.totalorder %s33, 0
      %p153 = por %p151, %p152
      %p154 = scmp.ne.s32.totalorder %s142, %s143
      %p155 = scmp.eq.s32.totalorder %s34, 1
      %p156 = por %p154, %p155
      %p158 = scmp.ne.s32.totalorder %s143, %s157
      %p159 = scmp.eq.s32.totalorder %s34, 0
      %p160 = por %p158, %p159
      %s162 = sadd.s32 %s161, 1
      %p165 = scmp.eq.s32.totalorder %s28, 1
      %p166 = scmp.ne.s32.totalorder %s161, %s163
      %p167 = scmp.eq.s32.totalorder %s28, 0
      %p168 = por %p166, %p167
      %p169 = scmp.ne.s32.totalorder %s161, %s163
      %p170 = scmp.eq.s32.totalorder %s33, 1
      %p171 = por %p169, %p170
      %p172 = scmp.ne.s32.totalorder %s163, %s164
      %p173 = scmp.eq.s32.totalorder %s33, 0
      %p174 = por %p172, %p173
      %p175 = scmp.ne.s32.totalorder %s163, %s164
      %p176 = scmp.eq.s32.totalorder %s34, 1
      %p177 = por %p175, %p176
      %p179 = scmp.ne.s32.totalorder %s164, %s178
      %p180 = scmp.eq.s32.totalorder %s34, 0
      %p181 = por %p179, %p180
      %s183 = sadd.s32 %s182, 1
      %p186 = scmp.eq.s32.totalorder %s28, 1
      %p187 = scmp.ne.s32.totalorder %s182, %s184
      %p188 = scmp.eq.s32.totalorder %s28, 0
      %p189 = por %p187, %p188
      %p190 = scmp.ne.s32.totalorder %s182, %s184
      %p191 = scmp.eq.s32.totalorder %s33, 1
      %p192 = por %p190, %p191
      %p193 = scmp.ne.s32.totalorder %s184, %s185
      %p194 = scmp.eq.s32.totalorder %s33, 0
      %p195 = por %p193, %p194
      %p196 = scmp.ne.s32.totalorder %s184, %s185
      %p197 = scmp.eq.s32.totalorder %s34, 1
      %p198 = por %p196, %p197
      %p200 = scmp.ne.s32.totalorder %s185, %s199
      %p201 = scmp.eq.s32.totalorder %s34, 0
      %p202 = por %p200, %p201
      %s204 = sadd.s32 %s203, 1
      %p207 = scmp.eq.s32.totalorder %s28, 1
      %p208 = scmp.ne.s32.totalorder %s203, %s205
      %p209 = scmp.eq.s32.totalorder %s28, 0
      %p210 = por %p208, %p209
      %p211 = scmp.ne.s32.totalorder %s203, %s205
      %p212 = scmp.eq.s32.totalorder %s33, 1
      %p213 = por %p211, %p212
      %p214 = scmp.ne.s32.totalorder %s205, %s206
      %p215 = scmp.eq.s32.totalorder %s33, 0
      %p216 = por %p214, %p215
      %p217 = scmp.ne.s32.totalorder %s205, %s206
      %p218 = scmp.eq.s32.totalorder %s34, 1
      %p219 = por %p217, %p218
      %p221 = scmp.ne.s32.totalorder %s206, %s220
      %p222 = scmp.eq.s32.totalorder %s34, 0
      %p223 = por %p221, %p222
      %s224 = ssub.s32 %s28, %s35
      %p225 = scmp.eq.s32.totalorder %s224, 0
      %s227 = sadd.s32 %s226, 1
      %s228 = scalar_select %p225, %s226, %s227
      %p231 = pneg %p225
      %p232 = scmp.eq.s32.totalorder %s28, 1
      %p233 = por %p231, %p232
      %p234 = scmp.ne.s32.totalorder %s226, %s229
      %p235 = scmp.eq.s32.totalorder %s28, 0
      %p236 = por %p234, %p235
      %p237 = scmp.ne.s32.totalorder %s226, %s229
      %p238 = scmp.eq.s32.totalorder %s33, 1
      %p239 = por %p237, %p238
      %p240 = scmp.ne.s32.totalorder %s229, %s230
      %p241 = scmp.eq.s32.totalorder %s33, 0
      %p242 = por %p240, %p241
      %p243 = scmp.ne.s32.totalorder %s229, %s230
      %p244 = scmp.eq.s32.totalorder %s34, 1
      %p245 = por %p243, %p244
      %p247 = scmp.ne.s32.totalorder %s230, %s246
      %p248 = scmp.eq.s32.totalorder %s34, 0
      %p249 = por %p247, %p248
      %p250 = scmp.le.s32.totalorder 1, %s28
      %p251 = scmp.lt.s32.totalorder %s28, 3
      %p252 = pnand %p250, %p251
      %p253 = pneg %p252
      // Predicated region
      $region9: #{hard_darkrank_loss.1} parent=5 // pred_check
        _
      $region10: #{hard_darkrank_loss.1} parent=5 // pred_check_branch
        %255 = sbr.rel (%p252) target = $region12
      $region11: #{hard_darkrank_loss.1} parent=5 // pred_region
        %s256 = ssub.s32 %s28, 1
        // Predicated region
        $region13: #{hard_darkrank_loss.1} parent=11 // pred_check
          %p257 = pneg %p153
        $region14: #{hard_darkrank_loss.1} parent=11 // pred_check_branch
          %259 = sbr.rel (%p257) target = $region16
        $region15: #{hard_darkrank_loss.1} parent=11 // pred_region
          %s261 = ssub.s32 2048, 2048
          %262 = vsyncadd [#allocation9], %s261
          %s263 = sshll.u32 [#allocation10], 4
          %s264 = int_to_ptr.vmem [resolvable:$true] %s263
          %269 = dma.hbm_to_vmem [thread:$0]  %s4, 2048, %s264, [#allocation9], 128, 128, 8
        $region16: #{hard_darkrank_loss.1} parent=11 // pred_fallthru
          _
        // Predicated region
        $region17: #{hard_darkrank_loss.1} parent=11 // pred_check
          %p270 = pneg %p174
        $region18: #{hard_darkrank_loss.1} parent=11 // pred_check_branch
          %272 = sbr.rel (%p270) target = $region20
        $region19: #{hard_darkrank_loss.1} parent=11 // pred_region
          %s274 = ssub.s32 2048, 2048
          %275 = vsyncadd [#allocation12], %s274
          %s276 = sshll.u32 [#allocation11], 4
          %s277 = int_to_ptr.vmem [resolvable:$true] %s276
          %282 = dma.hbm_to_vmem [thread:$0]  %s5, 2048, %s277, [#allocation12], 128, 128, 8
        $region20: #{hard_darkrank_loss.1} parent=11 // pred_fallthru
          _
        // Predicated region
        $region21: #{hard_darkrank_loss.1} parent=11 // pred_check
          %p283 = pneg %p195
        $region22: #{hard_darkrank_loss.1} parent=11 // pred_check_branch
          %285 = sbr.rel (%p283) target = $region24
        $region23: #{hard_darkrank_loss.1} parent=11 // pred_region
          %s287 = ssub.s32 16, 16
          %288 = vsyncadd [#allocation12], %s287
          %s290 = sshll.u32 [#allocation13], 4
          %s291 = int_to_ptr.vmem [resolvable:$true] %s290
          %293 = dma.hbm_to_vmem [thread:$0]  %s6, 16, %s291, [#allocation12]
        $region24: #{hard_darkrank_loss.1} parent=11 // pred_fallthru
          _
        // Predicated region
        $region25: #{hard_darkrank_loss.1} parent=11 // pred_check
          %p294 = pneg %p216
        $region26: #{hard_darkrank_loss.1} parent=11 // pred_check_branch
          %296 = sbr.rel (%p294) target = $region28
        $region27: #{hard_darkrank_loss.1} parent=11 // pred_region
          %s298 = ssub.s32 16, 16
          %299 = vsyncadd [#allocation15], %s298
          %s301 = sshll.u32 [#allocation14], 4
          %s302 = int_to_ptr.vmem [resolvable:$true] %s301
          %304 = dma.hbm_to_vmem [thread:$0]  %s7, 16, %s302, [#allocation15]
        $region28: #{hard_darkrank_loss.1} parent=11 // pred_fallthru
          _
      $region12: #{hard_darkrank_loss.1} parent=5 // pred_fallthru
        _
      %p305 = scmp.lt.s32.totalorder %s28, 2
      // Predicated region
      $region29: #{hard_darkrank_loss.1} parent=5 // pred_check
        %p306 = pneg %p305
      $region30: #{hard_darkrank_loss.1} parent=5 // pred_check_branch
        %308 = sbr.rel (%p306) target = $region32
      $region31: #{hard_darkrank_loss.1} parent=5 // pred_region
        // Predicated region
        $region33: #{hard_darkrank_loss.1} parent=31 // pred_check
          %p309 = pneg %p48
        $region34: #{hard_darkrank_loss.1} parent=31 // pred_check_branch
          %311 = sbr.rel (%p309) target = $region36
        $region35: #{hard_darkrank_loss.1} parent=31 // pred_region
          %s312 = sand.u32 %s38, 1
          %s313 = scalar_lea.sflag [#allocation3], %s312
          %s314 = sand.u32 %s38, 1
          %s315 = smul.addr %s314, 64
          %s316 = scalar_lea.vmem [#allocation2], %s315
          %s317 = smul.u32 8, %s28
          %s319 = ssub.s32 1024, 1024
          %320 = vsyncadd %s313, %s319
          %s321 = smul.addr %s317, 128
          %s322 = scalar_lea.hbm %s0, %s321
          %s323 = sshll.u32 %s316, 4
          %s324 = int_to_ptr.vmem [resolvable:$true] %s323
          %329 = dma.hbm_to_vmem [thread:$0]  %s322, 1024, %s324, %s313, 128, 128, 8
        $region36: #{hard_darkrank_loss.1} parent=31 // pred_fallthru
          _
        // Predicated region
        $region37: #{hard_darkrank_loss.1} parent=31 // pred_check
          %p330 = pneg %p74
        $region38: #{hard_darkrank_loss.1} parent=31 // pred_check_branch
          %332 = sbr.rel (%p330) target = $region40
        $region39: #{hard_darkrank_loss.1} parent=31 // pred_region
          %s333 = sand.u32 %s28, 1
          %s334 = scalar_lea.sflag [#allocation6], %s333
          %s335 = sand.u32 %s64, 1
          %s336 = smul.addr %s335, 64
          %s337 = scalar_lea.vmem [#allocation5], %s336
          %s338 = smul.u32 8, %s28
          %s340 = ssub.s32 1024, 1024
          %341 = vsyncadd %s334, %s340
          %s342 = smul.addr %s338, 128
          %s343 = scalar_lea.hbm %s1, %s342
          %s344 = sshll.u32 %s337, 4
          %s345 = int_to_ptr.vmem [resolvable:$true] %s344
          %350 = dma.hbm_to_vmem [thread:$0]  %s343, 1024, %s345, %s334, 128, 128, 8
        $region40: #{hard_darkrank_loss.1} parent=31 // pred_fallthru
          _
        // Predicated region
        $region41: #{hard_darkrank_loss.1} parent=31 // pred_check
          %p351 = pneg %p100
        $region42: #{hard_darkrank_loss.1} parent=31 // pred_check_branch
          %353 = sbr.rel (%p351) target = $region44
        $region43: #{hard_darkrank_loss.1} parent=31 // pred_region
          %s354 = sand.u32 %s28, 1
          %s355 = scalar_lea.sflag [#allocation6], %s354
          %s356 = sand.u32 %s90, 1
          %s357 = smul.addr %s356, 64
          %s358 = scalar_lea.vmem [#allocation7], %s357
          %s359 = smul.u32 8, %s28
          %s361 = ssub.s32 1024, 1024
          %362 = vsyncadd %s355, %s361
          %s363 = smul.addr %s359, 128
          %s364 = scalar_lea.hbm %s2, %s363
          %s365 = sshll.u32 %s358, 4
          %s366 = int_to_ptr.vmem [resolvable:$true] %s365
          %371 = dma.hbm_to_vmem [thread:$0]  %s364, 1024, %s366, %s355, 128, 128, 8
        $region44: #{hard_darkrank_loss.1} parent=31 // pred_fallthru
          _
        // Predicated region
        $region45: #{hard_darkrank_loss.1} parent=31 // pred_check
          %p372 = pneg %p126
        $region46: #{hard_darkrank_loss.1} parent=31 // pred_check_branch
          %374 = sbr.rel (%p372) target = $region48
        $region47: #{hard_darkrank_loss.1} parent=31 // pred_region
          %s375 = sand.u32 %s28, 1
          %s376 = scalar_lea.sflag [#allocation9], %s375
          %s377 = sand.u32 %s116, 1
          %s378 = smul.addr %s377, 64
          %s379 = scalar_lea.vmem [#allocation8], %s378
          %s380 = smul.u32 8, %s28
          %s382 = ssub.s32 1024, 1024
          %383 = vsyncadd %s376, %s382
          %s384 = smul.addr %s380, 128
          %s385 = scalar_lea.hbm %s3, %s384
          %s386 = sshll.u32 %s379, 4
          %s387 = int_to_ptr.vmem [resolvable:$true] %s386
          %392 = dma.hbm_to_vmem [thread:$0]  %s385, 1024, %s387, %s376, 128, 128, 8
        $region48: #{hard_darkrank_loss.1} parent=31 // pred_fallthru
          _
      $region32: #{hard_darkrank_loss.1} parent=5 // pred_fallthru
        _
      %p393 = scmp.le.s32.totalorder 1, %s28
      %p394 = scmp.lt.s32.totalorder %s28, 3
      %p395 = pnand %p393, %p394
      %p396 = pneg %p395
      // Predicated region
      $region49: #{hard_darkrank_loss.1} parent=5 // pred_check
        _
      $region50: #{hard_darkrank_loss.1} parent=5 // pred_check_branch
        %398 = sbr.rel (%p395) target = $region52
      $region51: #{hard_darkrank_loss.1} parent=5 // pred_region
        %s399 = ssub.s32 %s28, 1
        %s400 = sand.u32 %s41, 1
        %s401 = scalar_lea.sflag [#allocation3], %s400
        %s402 = sand.u32 %s41, 1
        %s403 = smul.addr %s402, 64
        %s404 = scalar_lea.vmem [#allocation2], %s403
        // Predicated region
        $region53: #{hard_darkrank_loss.1} parent=51 // pred_check
          %p405 = pneg %p54
        $region54: #{hard_darkrank_loss.1} parent=51 // pred_check_branch
          %407 = sbr.rel (%p405) target = $region56
        $region55: #{hard_darkrank_loss.1} parent=51 // pred_region
          %408 = dma.done %s401, 1024
        $region56: #{hard_darkrank_loss.1} parent=51 // pred_fallthru
          _
        %s409 = sand.u32 %s33, 1
        %s410 = scalar_lea.sflag [#allocation6], %s409
        %s411 = sand.u32 %s67, 1
        %s412 = smul.addr %s411, 64
        %s413 = scalar_lea.vmem [#allocation5], %s412
        // Predicated region
        $region57: #{hard_darkrank_loss.1} parent=51 // pred_check
          %p414 = pneg %p80
        $region58: #{hard_darkrank_loss.1} parent=51 // pred_check_branch
          %416 = sbr.rel (%p414) target = $region60
        $region59: #{hard_darkrank_loss.1} parent=51 // pred_region
          %417 = dma.done %s410, 1024
        $region60: #{hard_darkrank_loss.1} parent=51 // pred_fallthru
          _
        %s418 = sand.u32 %s33, 1
        %s419 = scalar_lea.sflag [#allocation6], %s418
        %s420 = sand.u32 %s93, 1
        %s421 = smul.addr %s420, 64
        %s422 = scalar_lea.vmem [#allocation7], %s421
        // Predicated region
        $region61: #{hard_darkrank_loss.1} parent=51 // pred_check
          %p423 = pneg %p106
        $region62: #{hard_darkrank_loss.1} parent=51 // pred_check_branch
          %425 = sbr.rel (%p423) target = $region64
        $region63: #{hard_darkrank_loss.1} parent=51 // pred_region
          %426 = dma.done %s419, 1024
        $region64: #{hard_darkrank_loss.1} parent=51 // pred_fallthru
          _
        %s427 = sand.u32 %s33, 1
        %s428 = scalar_lea.sflag [#allocation9], %s427
        %s429 = sand.u32 %s119, 1
        %s430 = smul.addr %s429, 64
        %s431 = scalar_lea.vmem [#allocation8], %s430
        // Predicated region
        $region65: #{hard_darkrank_loss.1} parent=51 // pred_check
          %p432 = pneg %p132
        $region66: #{hard_darkrank_loss.1} parent=51 // pred_check_branch
          %434 = sbr.rel (%p432) target = $region68
        $region67: #{hard_darkrank_loss.1} parent=51 // pred_region
          %435 = dma.done %s428, 1024
        $region68: #{hard_darkrank_loss.1} parent=51 // pred_fallthru
          _
        // Predicated region
        $region69: #{hard_darkrank_loss.1} parent=51 // pred_check
          %p436 = pneg %p153
        $region70: #{hard_darkrank_loss.1} parent=51 // pred_check_branch
          %438 = sbr.rel (%p436) target = $region72
        $region71: #{hard_darkrank_loss.1} parent=51 // pred_region
          %439 = dma.done [#allocation9], 2048
        $region72: #{hard_darkrank_loss.1} parent=51 // pred_fallthru
          _
        // Predicated region
        $region73: #{hard_darkrank_loss.1} parent=51 // pred_check
          %p440 = pneg %p174
        $region74: #{hard_darkrank_loss.1} parent=51 // pred_check_branch
          %442 = sbr.rel (%p440) target = $region76
        $region75: #{hard_darkrank_loss.1} parent=51 // pred_region
          %443 = dma.done [#allocation12], 2048
        $region76: #{hard_darkrank_loss.1} parent=51 // pred_fallthru
          _
        // Predicated region
        $region77: #{hard_darkrank_loss.1} parent=51 // pred_check
          %p444 = pneg %p195
        $region78: #{hard_darkrank_loss.1} parent=51 // pred_check_branch
          %446 = sbr.rel (%p444) target = $region80
        $region79: #{hard_darkrank_loss.1} parent=51 // pred_region
          %447 = dma.done [#allocation12], 16
        $region80: #{hard_darkrank_loss.1} parent=51 // pred_fallthru
          _
        // Predicated region
        $region81: #{hard_darkrank_loss.1} parent=51 // pred_check
          %p448 = pneg %p216
        $region82: #{hard_darkrank_loss.1} parent=51 // pred_check_branch
          %450 = sbr.rel (%p448) target = $region84
        $region83: #{hard_darkrank_loss.1} parent=51 // pred_region
          %451 = dma.done [#allocation15], 16
        $region84: #{hard_darkrank_loss.1} parent=51 // pred_fallthru
          _
        %s452 = sand.u32 %s41, 1
        %s453 = scalar_lea.sflag [#allocation3], %s452
        %s454 = sand.u32 %s41, 1
        %s455 = smul.addr %s454, 64
        %s456 = scalar_lea.vmem [#allocation2], %s455
        %p457 = pneg %p54
        %p458 = pneg %p51
        %s459 = sand.u32 %s33, 1
        %s460 = scalar_lea.sflag [#allocation6], %s459
        %s461 = sand.u32 %s67, 1
        %s462 = smul.addr %s461, 64
        %s463 = scalar_lea.vmem [#allocation5], %s462
        %p464 = pneg %p80
        %p465 = pneg %p77
        %s466 = sand.u32 %s33, 1
        %s467 = scalar_lea.sflag [#allocation6], %s466
        %s468 = sand.u32 %s93, 1
        %s469 = smul.addr %s468, 64
        %s470 = scalar_lea.vmem [#allocation7], %s469
        %p471 = pneg %p106
        %p472 = pneg %p103
        %s473 = sand.u32 %s33, 1
        %s474 = scalar_lea.sflag [#allocation9], %s473
        %s475 = sand.u32 %s119, 1
        %s476 = smul.addr %s475, 64
        %s477 = scalar_lea.vmem [#allocation8], %s476
        %p478 = pneg %p132
        %p479 = pneg %p129
        %p480 = pneg %p153
        %p481 = pneg %p150
        %p482 = pneg %p174
        %p483 = pneg %p171
        %p484 = pneg %p195
        %p485 = pneg %p192
        %p486 = pneg %p216
        %p487 = pneg %p213
        %p488 = pneg %p242
        %p489 = pneg %p239
        %s490 = sand.u32 %s229, 1
        %s491 = scalar_lea.sflag [#allocation4], %s490
        %s492 = sand.u32 %s229, 1
        %s493 = smul.addr %s492, 8
        %s494 = scalar_lea.vmem [#allocation16], %s493
        %s495 = smul.u32 8, %s33
        %s496 = smul.u32 8, %s33
        %s497 = smul.u32 8, %s33
        %s498 = smul.u32 8, %s33
        %s499 = smul.u32 %s33, 64
        %v500 = vld [vmem:[%s413] sm:$0xff]
        %v501 = vld [vmem:[%s413 + $0x8] sm:$0xff]
        %v502 = vld [vmem:[%s413 + $0x10] sm:$0xff]
        %v503 = vld [vmem:[%s413 + $0x18] sm:$0xff]
        %v504 = vld [vmem:[%s413 + $0x20] sm:$0xff]
        %v505 = vld [vmem:[%s413 + $0x28] sm:$0xff]
        %v506 = vld [vmem:[%s413 + $0x30] sm:$0xff]
        %v507 = vld [vmem:[%s413 + $0x38] sm:$0xff]
        %v508 = vld [vmem:[#allocation11] sm:$0xff]
        %v509 = vld [vmem:[#allocation11 + $0x8] sm:$0xff]
        %v510 = vld [vmem:[#allocation11 + $0x10] sm:$0xff]
        %v511 = vld [vmem:[#allocation11 + $0x18] sm:$0xff]
        %v512 = vld [vmem:[#allocation11 + $0x20] sm:$0xff]
        %v513 = vld [vmem:[#allocation11 + $0x28] sm:$0xff]
        %v514 = vld [vmem:[#allocation11 + $0x30] sm:$0xff]
        %v515 = vld [vmem:[#allocation11 + $0x38] sm:$0xff]
        %v516 = vld [vmem:[#allocation11 + $0x40] sm:$0xff]
        %v517 = vld [vmem:[#allocation11 + $0x48] sm:$0xff]
        %v518 = vld [vmem:[#allocation11 + $0x50] sm:$0xff]
        %v519 = vld [vmem:[#allocation11 + $0x58] sm:$0xff]
        %v520 = vld [vmem:[#allocation11 + $0x60] sm:$0xff]
        %v521 = vld [vmem:[#allocation11 + $0x68] sm:$0xff]
        %v522 = vld [vmem:[#allocation11 + $0x70] sm:$0xff]
        %v523 = vld [vmem:[#allocation11 + $0x78] sm:$0xff]
        %524 = vmatprep.subr.mxu0 0.0
        %525 = vmatpush1.msra.mxu0 %v508
        %526 = vmatprep.subr.mxu0 0.0
        %527 = vmatpush1.msra.mxu0 %v509
        %528 = vmatprep.subr.mxu0 0.0
        %529 = vmatpush1.msra.mxu0 %v510
        %530 = vmatprep.subr.mxu0 0.0
        %531 = vmatpush1.msra.mxu0 %v511
        %532 = vmatprep.subr.mxu0 0.0
        %533 = vmatpush1.msra.mxu0 %v512
        %534 = vmatprep.subr.mxu0 0.0
        %535 = vmatpush1.msra.mxu0 %v513
        %536 = vmatprep.subr.mxu0 0.0
        %537 = vmatpush1.msra.mxu0 %v514
        %538 = vmatprep.subr.mxu0 0.0
        %539 = vmatpush1.msra.mxu0 %v515
        %540 = vmatprep.subr.mxu0 0.0
        %541 = vmatpush1.msra.mxu0 %v516
        %542 = vmatprep.subr.mxu0 0.0
        %543 = vmatpush1.msra.mxu0 %v517
        %544 = vmatprep.subr.mxu0 0.0
        %545 = vmatpush1.msra.mxu0 %v518
        %546 = vmatprep.subr.mxu0 0.0
        %547 = vmatpush1.msra.mxu0 %v519
        %548 = vmatprep.subr.mxu0 0.0
        %549 = vmatpush1.msra.mxu0 %v520
        %550 = vmatprep.subr.mxu0 0.0
        %551 = vmatpush1.msra.mxu0 %v521
        %552 = vmatprep.subr.mxu0 0.0
        %553 = vmatpush1.msra.mxu0 %v522
        %554 = vmatprep.subr.mxu0 0.0
        %555 = vmatpush1.msra.mxu0 %v523
        %556 = vmatprep.subr.mxu0 0.0
        %557 = vmatpush1.msra.mxu0 0.0
        %558 = vmatprep.subr.mxu0 0.0
        %559 = vmatpush1.msra.mxu0 0.0
        %560 = vmatprep.subr.mxu0 0.0
        %561 = vmatpush1.msra.mxu0 0.0
        %562 = vmatprep.subr.mxu0 0.0
        %563 = vmatpush1.msra.mxu0 0.0
        %564 = vmatprep.subr.mxu0 0.0
        %565 = vmatpush1.msra.mxu0 0.0
        %566 = vmatprep.subr.mxu0 0.0
        %567 = vmatpush1.msra.mxu0 0.0
        %568 = vmatprep.subr.mxu0 0.0
        %569 = vmatpush1.msra.mxu0 0.0
        %570 = vmatprep.subr.mxu0 0.0
        %571 = vmatpush1.msra.mxu0 0.0
        %572 = vmatprep.subr.mxu0 0.0
        %573 = vmatpush1.msra.mxu0 0.0
        %574 = vmatprep.subr.mxu0 0.0
        %575 = vmatpush1.msra.mxu0 0.0
        %576 = vmatprep.subr.mxu0 0.0
        %577 = vmatpush1.msra.mxu0 0.0
        %578 = vmatprep.subr.mxu0 0.0
        %579 = vmatpush1.msra.mxu0 0.0
        %580 = vmatprep.subr.mxu0 0.0
        %581 = vmatpush1.msra.mxu0 0.0
        %582 = vmatprep.subr.mxu0 0.0
        %583 = vmatpush1.msra.mxu0 0.0
        %584 = vmatprep.subr.mxu0 0.0
        %585 = vmatpush1.msra.mxu0 0.0
        %586 = vmatprep.subr.mxu0 0.0
        %587 = vmatpush1.msra.mxu0 0.0
        %588 = vmatprep.mubr.f32.mxu0 0.0
        %589 = vmatmul.mubr.f32.gmra.mrb[0].mxu0 %v500
        %v590 = vpop.f32.mrb[0].mxu0
        %v591 = vadd.f32 0.0, %v590
        %v592 = vpop.f32.mrb[0].mxu0
        %593 = vmatprep.mubr.f32.mxu0 0.0
        %594 = vmatmul.mubr.f32.gmra.mrb[0].mxu0 %v501
        %v595 = vpop.f32.mrb[0].mxu0
        %v596 = vadd.f32 0.0, %v595
        %v597 = vpop.f32.mrb[0].mxu0
        %598 = vmatprep.mubr.f32.mxu0 0.0
        %599 = vmatmul.mubr.f32.gmra.mrb[0].mxu0 %v502
        %v600 = vpop.f32.mrb[0].mxu0
        %v601 = vadd.f32 0.0, %v600
        %v602 = vpop.f32.mrb[0].mxu0
        %603 = vmatprep.mubr.f32.mxu0 0.0
        %604 = vmatmul.mubr.f32.gmra.mrb[0].mxu0 %v503
        %v605 = vpop.f32.mrb[0].mxu0
        %v606 = vadd.f32 0.0, %v605
        %v607 = vpop.f32.mrb[0].mxu0
        %608 = vmatprep.mubr.f32.mxu0 0.0
        %609 = vmatmul.mubr.f32.gmra.mrb[0].mxu0 %v504
        %v610 = vpop.f32.mrb[0].mxu0
        %v611 = vadd.f32 0.0, %v610
        %v612 = vpop.f32.mrb[0].mxu0
        %613 = vmatprep.mubr.f32.mxu0 0.0
        %614 = vmatmul.mubr.f32.gmra.mrb[0].mxu0 %v505
        %v615 = vpop.f32.mrb[0].mxu0
        %v616 = vadd.f32 0.0, %v615
        %v617 = vpop.f32.mrb[0].mxu0
        %618 = vmatprep.mubr.f32.mxu0 0.0
        %619 = vmatmul.mubr.f32.gmra.mrb[0].mxu0 %v506
        %v620 = vpop.f32.mrb[0].mxu0
        %v621 = vadd.f32 0.0, %v620
        %v622 = vpop.f32.mrb[0].mxu0
        %623 = vmatprep.mubr.f32.mxu0 0.0
        %624 = vmatmul.mubr.f32.gmra.mrb[0].mxu0 %v507
        %v625 = vpop.f32.mrb[0].mxu0
        %v626 = vadd.f32 0.0, %v625
        %v627 = vpop.f32.mrb[0].mxu0
        %628 = vdwg.mxu0
        %v629 = vld [vmem:[%s404] sm:$0xff]
        %v630 = vld [vmem:[%s404 + $0x8] sm:$0xff]
        %v631 = vld [vmem:[%s404 + $0x10] sm:$0xff]
        %v632 = vld [vmem:[%s404 + $0x18] sm:$0xff]
        %v633 = vld [vmem:[%s404 + $0x20] sm:$0xff]
        %v634 = vld [vmem:[%s404 + $0x28] sm:$0xff]
        %v635 = vld [vmem:[%s404 + $0x30] sm:$0xff]
        %v636 = vld [vmem:[%s404 + $0x38] sm:$0xff]
        %v637 = vld [vmem:[#allocation10] sm:$0xff]
        %v638 = vld [vmem:[#allocation10 + $0x8] sm:$0xff]
        %v639 = vld [vmem:[#allocation10 + $0x10] sm:$0xff]
        %v640 = vld [vmem:[#allocation10 + $0x18] sm:$0xff]
        %v641 = vld [vmem:[#allocation10 + $0x20] sm:$0xff]
        %v642 = vld [vmem:[#allocation10 + $0x28] sm:$0xff]
        %v643 = vld [vmem:[#allocation10 + $0x30] sm:$0xff]
        %v644 = vld [vmem:[#allocation10 + $0x38] sm:$0xff]
        %v645 = vld [vmem:[#allocation10 + $0x40] sm:$0xff]
        %v646 = vld [vmem:[#allocation10 + $0x48] sm:$0xff]
        %v647 = vld [vmem:[#allocation10 + $0x50] sm:$0xff]
        %v648 = vld [vmem:[#allocation10 + $0x58] sm:$0xff]
        %v649 = vld [vmem:[#allocation10 + $0x60] sm:$0xff]
        %v650 = vld [vmem:[#allocation10 + $0x68] sm:$0xff]
        %v651 = vld [vmem:[#allocation10 + $0x70] sm:$0xff]
        %v652 = vld [vmem:[#allocation10 + $0x78] sm:$0xff]
        %653 = vmatprep.subr.mxu0 0.0
        %654 = vmatpush1.msra.mxu0 %v637
        %655 = vmatprep.subr.mxu0 0.0
        %656 = vmatpush1.msra.mxu0 %v638
        %657 = vmatprep.subr.mxu0 0.0
        %658 = vmatpush1.msra.mxu0 %v639
        %659 = vmatprep.subr.mxu0 0.0
        %660 = vmatpush1.msra.mxu0 %v640
        %661 = vmatprep.subr.mxu0 0.0
        %662 = vmatpush1.msra.mxu0 %v641
        %663 = vmatprep.subr.mxu0 0.0
        %664 = vmatpush1.msra.mxu0 %v642
        %665 = vmatprep.subr.mxu0 0.0
        %666 = vmatpush1.msra.mxu0 %v643
        %667 = vmatprep.subr.mxu0 0.0
        %668 = vmatpush1.msra.mxu0 %v644
        %669 = vmatprep.subr.mxu0 0.0
        %670 = vmatpush1.msra.mxu0 %v645
        %671 = vmatprep.subr.mxu0 0.0
        %672 = vmatpush1.msra.mxu0 %v646
        %673 = vmatprep.subr.mxu0 0.0
        %674 = vmatpush1.msra.mxu0 %v647
        %675 = vmatprep.subr.mxu0 0.0
        %676 = vmatpush1.msra.mxu0 %v648
        %677 = vmatprep.subr.mxu0 0.0
        %678 = vmatpush1.msra.mxu0 %v649
        %679 = vmatprep.subr.mxu0 0.0
        %680 = vmatpush1.msra.mxu0 %v650
        %681 = vmatprep.subr.mxu0 0.0
        %682 = vmatpush1.msra.mxu0 %v651
        %683 = vmatprep.subr.mxu0 0.0
        %684 = vmatpush1.msra.mxu0 %v652
        %685 = vmatprep.subr.mxu0 0.0
        %686 = vmatpush1.msra.mxu0 0.0
        %687 = vmatprep.subr.mxu0 0.0
        %688 = vmatpush1.msra.mxu0 0.0
        %689 = vmatprep.subr.mxu0 0.0
        %690 = vmatpush1.msra.mxu0 0.0
        %691 = vmatprep.subr.mxu0 0.0
        %692 = vmatpush1.msra.mxu0 0.0
        %693 = vmatprep.subr.mxu0 0.0
        %694 = vmatpush1.msra.mxu0 0.0
        %695 = vmatprep.subr.mxu0 0.0
        %696 = vmatpush1.msra.mxu0 0.0
        %697 = vmatprep.subr.mxu0 0.0
        %698 = vmatpush1.msra.mxu0 0.0
        %699 = vmatprep.subr.mxu0 0.0
        %700 = vmatpush1.msra.mxu0 0.0
        %701 = vmatprep.subr.mxu0 0.0
        %702 = vmatpush1.msra.mxu0 0.0
        %703 = vmatprep.subr.mxu0 0.0
        %704 = vmatpush1.msra.mxu0 0.0
        %705 = vmatprep.subr.mxu0 0.0
        %706 = vmatpush1.msra.mxu0 0.0
        %707 = vmatprep.subr.mxu0 0.0
        %708 = vmatpush1.msra.mxu0 0.0
        %709 = vmatprep.subr.mxu0 0.0
        %710 = vmatpush1.msra.mxu0 0.0
        %711 = vmatprep.subr.mxu0 0.0
        %712 = vmatpush1.msra.mxu0 0.0
        %713 = vmatprep.subr.mxu0 0.0
        %714 = vmatpush1.msra.mxu0 0.0
        %715 = vmatprep.subr.mxu0 0.0
        %716 = vmatpush1.msra.mxu0 0.0
        %717 = vmatprep.mubr.f32.mxu0 0.0
        %718 = vmatmul.mubr.f32.gmra.mrb[0].mxu0 %v629
        %v719 = vpop.f32.mrb[0].mxu0
        %v720 = vadd.f32 0.0, %v719
        %v721 = vpop.f32.mrb[0].mxu0
        %722 = vmatprep.mubr.f32.mxu0 0.0
        %723 = vmatmul.mubr.f32.gmra.mrb[0].mxu0 %v630
        %v724 = vpop.f32.mrb[0].mxu0
        %v725 = vadd.f32 0.0, %v724
        %v726 = vpop.f32.mrb[0].mxu0
        %727 = vmatprep.mubr.f32.mxu0 0.0
        %728 = vmatmul.mubr.f32.gmra.mrb[0].mxu0 %v631
        %v729 = vpop.f32.mrb[0].mxu0
        %v730 = vadd.f32 0.0, %v729
        %v731 = vpop.f32.mrb[0].mxu0
        %732 = vmatprep.mubr.f32.mxu0 0.0
        %733 = vmatmul.mubr.f32.gmra.mrb[0].mxu0 %v632
        %v734 = vpop.f32.mrb[0].mxu0
        %v735 = vadd.f32 0.0, %v734
        %v736 = vpop.f32.mrb[0].mxu0
        %737 = vmatprep.mubr.f32.mxu0 0.0
        %738 = vmatmul.mubr.f32.gmra.mrb[0].mxu0 %v633
        %v739 = vpop.f32.mrb[0].mxu0
        %v740 = vadd.f32 0.0, %v739
        %v741 = vpop.f32.mrb[0].mxu0
        %742 = vmatprep.mubr.f32.mxu0 0.0
        %743 = vmatmul.mubr.f32.gmra.mrb[0].mxu0 %v634
        %v744 = vpop.f32.mrb[0].mxu0
        %v745 = vadd.f32 0.0, %v744
        %v746 = vpop.f32.mrb[0].mxu0
        %747 = vmatprep.mubr.f32.mxu0 0.0
        %748 = vmatmul.mubr.f32.gmra.mrb[0].mxu0 %v635
        %v749 = vpop.f32.mrb[0].mxu0
        %v750 = vadd.f32 0.0, %v749
        %v751 = vpop.f32.mrb[0].mxu0
        %752 = vmatprep.mubr.f32.mxu0 0.0
        %753 = vmatmul.mubr.f32.gmra.mrb[0].mxu0 %v636
        %v754 = vpop.f32.mrb[0].mxu0
        %v755 = vadd.f32 0.0, %v754
        %v756 = vpop.f32.mrb[0].mxu0
        %757 = vdwg.mxu0
        %v758 = vld [vmem:[%s431] sm:$0xff]
        %v759 = vld [vmem:[%s431 + $0x8] sm:$0xff]
        %v760 = vld [vmem:[%s431 + $0x10] sm:$0xff]
        %v761 = vld [vmem:[%s431 + $0x18] sm:$0xff]
        %v762 = vld [vmem:[%s431 + $0x20] sm:$0xff]
        %v763 = vld [vmem:[%s431 + $0x28] sm:$0xff]
        %v764 = vld [vmem:[%s431 + $0x30] sm:$0xff]
        %v765 = vld [vmem:[%s431 + $0x38] sm:$0xff]
        %v766 = vld [vmem:[#allocation14] sm:$0x1]
        %768 = vset.pattern.permute.xlu0 0
        %769 = vperm.xlu0 %768, %v758
        %v770 = vpop.permute.xlu0 %769
        %773 = vset.pattern.permute.xlu0 0
        %774 = vperm.xlu0 %773, %v759
        %v775 = vpop.permute.xlu0 %774
        %778 = vset.pattern.permute.xlu0 0
        %779 = vperm.xlu0 %778, %v760
        %v780 = vpop.permute.xlu0 %779
        %783 = vset.pattern.permute.xlu0 0
        %784 = vperm.xlu0 %783, %v761
        %v785 = vpop.permute.xlu0 %784
        %788 = vset.pattern.permute.xlu0 0
        %789 = vperm.xlu0 %788, %v762
        %v790 = vpop.permute.xlu0 %789
        %793 = vset.pattern.permute.xlu0 0
        %794 = vperm.xlu0 %793, %v763
        %v795 = vpop.permute.xlu0 %794
        %798 = vset.pattern.permute.xlu0 0
        %799 = vperm.xlu0 %798, %v764
        %v800 = vpop.permute.xlu0 %799
        %803 = vset.pattern.permute.xlu0 0
        %804 = vperm.xlu0 %803, %v765
        %v805 = vpop.permute.xlu0 %804
        %v808 = vlaneseq
        %v809 = vshrl.u32 %v808, 7
        %v810 = vsub.s32 0, %v809
        %v811 = vrot.slane %v766, %v810
        %v813 = vadd.f32 %v770, %v811
        %v814 = vadd.f32 %v775, %v811
        %v815 = vadd.f32 %v780, %v811
        %v816 = vadd.f32 %v785, %v811
        %v817 = vadd.f32 %v790, %v811
        %v818 = vadd.f32 %v795, %v811
        %v819 = vadd.f32 %v800, %v811
        %v820 = vadd.f32 %v805, %v811
        %v821 = vmul.f32 %v591, 2.0
        %v822 = vmul.f32 %v596, 2.0
        %v823 = vmul.f32 %v601, 2.0
        %v824 = vmul.f32 %v606, 2.0
        %v825 = vmul.f32 %v611, 2.0
        %v826 = vmul.f32 %v616, 2.0
        %v827 = vmul.f32 %v621, 2.0
        %v828 = vmul.f32 %v626, 2.0
        %v829 = vsub.f32 %v813, %v821
        %v830 = vsub.f32 %v814, %v822
        %v831 = vsub.f32 %v815, %v823
        %v832 = vsub.f32 %v816, %v824
        %v833 = vsub.f32 %v817, %v825
        %v834 = vsub.f32 %v818, %v826
        %v835 = vsub.f32 %v819, %v827
        %v836 = vsub.f32 %v820, %v828
        %v837 = vmax.f32 %v829, 1e-12
        %v838 = vmax.f32 %v830, 1e-12
        %v839 = vmax.f32 %v831, 1e-12
        %v840 = vmax.f32 %v832, 1e-12
        %v841 = vmax.f32 %v833, 1e-12
        %v842 = vmax.f32 %v834, 1e-12
        %v843 = vmax.f32 %v835, 1e-12
        %v844 = vmax.f32 %v836, 1e-12
        %v845 = vld [vmem:[%s422] sm:$0xff]
        %v846 = vld [vmem:[%s422 + $0x8] sm:$0xff]
        %v847 = vld [vmem:[%s422 + $0x10] sm:$0xff]
        %v848 = vld [vmem:[%s422 + $0x18] sm:$0xff]
        %v849 = vld [vmem:[%s422 + $0x20] sm:$0xff]
        %v850 = vld [vmem:[%s422 + $0x28] sm:$0xff]
        %v851 = vld [vmem:[%s422 + $0x30] sm:$0xff]
        %v852 = vld [vmem:[%s422 + $0x38] sm:$0xff]
        %v853 = vld [vmem:[#allocation13] sm:$0x1]
        %855 = vset.pattern.permute.xlu0 0
        %856 = vperm.xlu0 %855, %v845
        %v857 = vpop.permute.xlu0 %856
        %860 = vset.pattern.permute.xlu0 0
        %861 = vperm.xlu0 %860, %v846
        %v862 = vpop.permute.xlu0 %861
        %865 = vset.pattern.permute.xlu0 0
        %866 = vperm.xlu0 %865, %v847
        %v867 = vpop.permute.xlu0 %866
        %870 = vset.pattern.permute.xlu0 0
        %871 = vperm.xlu0 %870, %v848
        %v872 = vpop.permute.xlu0 %871
        %875 = vset.pattern.permute.xlu0 0
        %876 = vperm.xlu0 %875, %v849
        %v877 = vpop.permute.xlu0 %876
        %880 = vset.pattern.permute.xlu0 0
        %881 = vperm.xlu0 %880, %v850
        %v882 = vpop.permute.xlu0 %881
        %885 = vset.pattern.permute.xlu0 0
        %886 = vperm.xlu0 %885, %v851
        %v887 = vpop.permute.xlu0 %886
        %890 = vset.pattern.permute.xlu0 0
        %891 = vperm.xlu0 %890, %v852
        %v892 = vpop.permute.xlu0 %891
        %v895 = vlaneseq
        %v896 = vshrl.u32 %v895, 7
        %v897 = vsub.s32 0, %v896
        %v898 = vrot.slane %v853, %v897
        %v900 = vadd.f32 %v857, %v898
        %v901 = vadd.f32 %v862, %v898
        %v902 = vadd.f32 %v867, %v898
        %v903 = vadd.f32 %v872, %v898
        %v904 = vadd.f32 %v877, %v898
        %v905 = vadd.f32 %v882, %v898
        %v906 = vadd.f32 %v887, %v898
        %v907 = vadd.f32 %v892, %v898
        %v908 = vmul.f32 %v720, 2.0
        %v909 = vmul.f32 %v725, 2.0
        %v910 = vmul.f32 %v730, 2.0
        %v911 = vmul.f32 %v735, 2.0
        %v912 = vmul.f32 %v740, 2.0
        %v913 = vmul.f32 %v745, 2.0
        %v914 = vmul.f32 %v750, 2.0
        %v915 = vmul.f32 %v755, 2.0
        %v916 = vsub.f32 %v900, %v908
        %v917 = vsub.f32 %v901, %v909
        %v918 = vsub.f32 %v902, %v910
        %v919 = vsub.f32 %v903, %v911
        %v920 = vsub.f32 %v904, %v912
        %v921 = vsub.f32 %v905, %v913
        %v922 = vsub.f32 %v906, %v914
        %v923 = vsub.f32 %v907, %v915
        %v924 = vmax.f32 %v916, 1e-12
        %v925 = vmax.f32 %v917, 1e-12
        %v926 = vmax.f32 %v918, 1e-12
        %v927 = vmax.f32 %v919, 1e-12
        %v928 = vmax.f32 %v920, 1e-12
        %v929 = vmax.f32 %v921, 1e-12
        %v930 = vmax.f32 %v922, 1e-12
        %v931 = vmax.f32 %v923, 1e-12
        %v932 = vlaneseq
        %v933 = vand.u32 %v932, 127
        %v934 = vlaneseq
        %v935 = vshrl.u32 %v934, 7
        %v936 = vadd.s32 %v935, 8
        %v937 = vadd.s32 %v935, 16
        %v938 = vadd.s32 %v935, 24
        %v939 = vadd.s32 %v935, 32
        %v940 = vadd.s32 %v935, 40
        %v941 = vadd.s32 %v935, 48
        %v942 = vadd.s32 %v935, 56
        %v943 = vstv %s499
        %v944 = vadd.s32 %v935, %v943
        %v945 = vadd.s32 %v936, %v943
        %v946 = vadd.s32 %v937, %v943
        %v947 = vadd.s32 %v938, %v943
        %v948 = vadd.s32 %v939, %v943
        %v949 = vadd.s32 %v940, %v943
        %v950 = vadd.s32 %v941, %v943
        %v951 = vadd.s32 %v942, %v943
        %vm952 = vcmp.eq.s32.totalorder %v933, %v944
        %vm953 = vcmp.eq.s32.totalorder %v933, %v945
        %vm954 = vcmp.eq.s32.totalorder %v933, %v946
        %vm955 = vcmp.eq.s32.totalorder %v933, %v947
        %vm956 = vcmp.eq.s32.totalorder %v933, %v948
        %vm957 = vcmp.eq.s32.totalorder %v933, %v949
        %vm958 = vcmp.eq.s32.totalorder %v933, %v950
        %vm959 = vcmp.eq.s32.totalorder %v933, %v951
        %vm960 = vcmp.ge.s32.totalorder %v933, 8
        %vm961 = vmor %vm952, %vm960
        %vm962 = vmor %vm953, %vm960
        %vm963 = vmor %vm954, %vm960
        %vm964 = vmor %vm955, %vm960
        %vm965 = vmor %vm956, %vm960
        %vm966 = vmor %vm957, %vm960
        %vm967 = vmor %vm958, %vm960
        %vm968 = vmor %vm959, %vm960
        %v969 = vsel %vm961, 3e+38, %v837
        %v970 = vsel %vm962, 3e+38, %v838
        %v971 = vsel %vm963, 3e+38, %v839
        %v972 = vsel %vm964, 3e+38, %v840
        %v973 = vsel %vm965, 3e+38, %v841
        %v974 = vsel %vm966, 3e+38, %v842
        %v975 = vsel %vm967, 3e+38, %v843
        %v976 = vsel %vm968, 3e+38, %v844
        %977 = vmin.xlane.f32.xlu0 %v969
        %v978 = vpop.xlane.xlu0 %977
        %979 = vmin.xlane.f32.xlu0 %v970
        %v980 = vpop.xlane.xlu0 %979
        %981 = vmin.xlane.f32.xlu0 %v971
        %v982 = vpop.xlane.xlu0 %981
        %983 = vmin.xlane.f32.xlu0 %v972
        %v984 = vpop.xlane.xlu0 %983
        %985 = vmin.xlane.f32.xlu0 %v973
        %v986 = vpop.xlane.xlu0 %985
        %987 = vmin.xlane.f32.xlu0 %v974
        %v988 = vpop.xlane.xlu0 %987
        %989 = vmin.xlane.f32.xlu0 %v975
        %v990 = vpop.xlane.xlu0 %989
        %991 = vmin.xlane.f32.xlu0 %v976
        %v992 = vpop.xlane.xlu0 %991
        %vm993 = vcmp.eq.f32.partialorder %v969, %v978
        %vm994 = vcmp.eq.f32.partialorder %v970, %v980
        %vm995 = vcmp.eq.f32.partialorder %v971, %v982
        %vm996 = vcmp.eq.f32.partialorder %v972, %v984
        %vm997 = vcmp.eq.f32.partialorder %v973, %v986
        %vm998 = vcmp.eq.f32.partialorder %v974, %v988
        %vm999 = vcmp.eq.f32.partialorder %v975, %v990
        %vm1000 = vcmp.eq.f32.partialorder %v976, %v992
        %v1001 = vsel %vm993, %v933, 128
        %v1002 = vsel %vm994, %v933, 128
        %v1003 = vsel %vm995, %v933, 128
        %v1004 = vsel %vm996, %v933, 128
        %v1005 = vsel %vm997, %v933, 128
        %v1006 = vsel %vm998, %v933, 128
        %v1007 = vsel %vm999, %v933, 128
        %v1008 = vsel %vm1000, %v933, 128
        %v1009 = vand.u32 %v1001, 65535
        %v1010 = vshra.s32 %v1001, 16
        %v1011 = vcvt.s32.f32 %v1009
        %v1012 = vcvt.s32.f32 %v1010
        %1013 = vmin.xlane.f32.xlu0 %v1012
        %v1014 = vpop.xlane.xlu0 %1013
        %vm1015 = vcmp.eq.f32.partialorder %v1012, %v1014
        %v1016 = vsel %vm1015, %v1011, inf
        %1017 = vmin.xlane.f32.xlu0 %v1016
        %v1018 = vpop.xlane.xlu0 %1017
        %v1019 = vcvt.f32.s32 %v1018
        %v1020 = vcvt.f32.s32 %v1014
        %v1021 = vshll.u32 %v1020, 16
        %v1022 = vadd.s32 %v1021, %v1019
        %v1023 = vand.u32 %v1002, 65535
        %v1024 = vshra.s32 %v1002, 16
        %v1025 = vcvt.s32.f32 %v1023
        %v1026 = vcvt.s32.f32 %v1024
        %1027 = vmin.xlane.f32.xlu0 %v1026
        %v1028 = vpop.xlane.xlu0 %1027
        %vm1029 = vcmp.eq.f32.partialorder %v1026, %v1028
        %v1030 = vsel %vm1029, %v1025, inf
        %1031 = vmin.xlane.f32.xlu0 %v1030
        %v1032 = vpop.xlane.xlu0 %1031
        %v1033 = vcvt.f32.s32 %v1032
        %v1034 = vcvt.f32.s32 %v1028
        %v1035 = vshll.u32 %v1034, 16
        %v1036 = vadd.s32 %v1035, %v1033
        %v1037 = vand.u32 %v1003, 65535
        %v1038 = vshra.s32 %v1003, 16
        %v1039 = vcvt.s32.f32 %v1037
        %v1040 = vcvt.s32.f32 %v1038
        %1041 = vmin.xlane.f32.xlu0 %v1040
        %v1042 = vpop.xlane.xlu0 %1041
        %vm1043 = vcmp.eq.f32.partialorder %v1040, %v1042
        %v1044 = vsel %vm1043, %v1039, inf
        %1045 = vmin.xlane.f32.xlu0 %v1044
        %v1046 = vpop.xlane.xlu0 %1045
        %v1047 = vcvt.f32.s32 %v1046
        %v1048 = vcvt.f32.s32 %v1042
        %v1049 = vshll.u32 %v1048, 16
        %v1050 = vadd.s32 %v1049, %v1047
        %v1051 = vand.u32 %v1004, 65535
        %v1052 = vshra.s32 %v1004, 16
        %v1053 = vcvt.s32.f32 %v1051
        %v1054 = vcvt.s32.f32 %v1052
        %1055 = vmin.xlane.f32.xlu0 %v1054
        %v1056 = vpop.xlane.xlu0 %1055
        %vm1057 = vcmp.eq.f32.partialorder %v1054, %v1056
        %v1058 = vsel %vm1057, %v1053, inf
        %1059 = vmin.xlane.f32.xlu0 %v1058
        %v1060 = vpop.xlane.xlu0 %1059
        %v1061 = vcvt.f32.s32 %v1060
        %v1062 = vcvt.f32.s32 %v1056
        %v1063 = vshll.u32 %v1062, 16
        %v1064 = vadd.s32 %v1063, %v1061
        %v1065 = vand.u32 %v1005, 65535
        %v1066 = vshra.s32 %v1005, 16
        %v1067 = vcvt.s32.f32 %v1065
        %v1068 = vcvt.s32.f32 %v1066
        %1069 = vmin.xlane.f32.xlu0 %v1068
        %v1070 = vpop.xlane.xlu0 %1069
        %vm1071 = vcmp.eq.f32.partialorder %v1068, %v1070
        %v1072 = vsel %vm1071, %v1067, inf
        %1073 = vmin.xlane.f32.xlu0 %v1072
        %v1074 = vpop.xlane.xlu0 %1073
        %v1075 = vcvt.f32.s32 %v1074
        %v1076 = vcvt.f32.s32 %v1070
        %v1077 = vshll.u32 %v1076, 16
        %v1078 = vadd.s32 %v1077, %v1075
        %v1079 = vand.u32 %v1006, 65535
        %v1080 = vshra.s32 %v1006, 16
        %v1081 = vcvt.s32.f32 %v1079
        %v1082 = vcvt.s32.f32 %v1080
        %1083 = vmin.xlane.f32.xlu0 %v1082
        %v1084 = vpop.xlane.xlu0 %1083
        %vm1085 = vcmp.eq.f32.partialorder %v1082, %v1084
        %v1086 = vsel %vm1085, %v1081, inf
        %1087 = vmin.xlane.f32.xlu0 %v1086
        %v1088 = vpop.xlane.xlu0 %1087
        %v1089 = vcvt.f32.s32 %v1088
        %v1090 = vcvt.f32.s32 %v1084
        %v1091 = vshll.u32 %v1090, 16
        %v1092 = vadd.s32 %v1091, %v1089
        %v1093 = vand.u32 %v1007, 65535
        %v1094 = vshra.s32 %v1007, 16
        %v1095 = vcvt.s32.f32 %v1093
        %v1096 = vcvt.s32.f32 %v1094
        %1097 = vmin.xlane.f32.xlu0 %v1096
        %v1098 = vpop.xlane.xlu0 %1097
        %vm1099 = vcmp.eq.f32.partialorder %v1096, %v1098
        %v1100 = vsel %vm1099, %v1095, inf
        %1101 = vmin.xlane.f32.xlu0 %v1100
        %v1102 = vpop.xlane.xlu0 %1101
        %v1103 = vcvt.f32.s32 %v1102
        %v1104 = vcvt.f32.s32 %v1098
        %v1105 = vshll.u32 %v1104, 16
        %v1106 = vadd.s32 %v1105, %v1103
        %v1107 = vand.u32 %v1008, 65535
        %v1108 = vshra.s32 %v1008, 16
        %v1109 = vcvt.s32.f32 %v1107
        %v1110 = vcvt.s32.f32 %v1108
        %1111 = vmin.xlane.f32.xlu0 %v1110
        %v1112 = vpop.xlane.xlu0 %1111
        %vm1113 = vcmp.eq.f32.partialorder %v1110, %v1112
        %v1114 = vsel %vm1113, %v1109, inf
        %1115 = vmin.xlane.f32.xlu0 %v1114
        %v1116 = vpop.xlane.xlu0 %1115
        %v1117 = vcvt.f32.s32 %v1116
        %v1118 = vcvt.f32.s32 %v1112
        %v1119 = vshll.u32 %v1118, 16
        %v1120 = vadd.s32 %v1119, %v1117
        %vm1121 = vcmp.eq.s32.totalorder %v933, %v1022
        %vm1122 = vcmp.eq.s32.totalorder %v933, %v1036
        %vm1123 = vcmp.eq.s32.totalorder %v933, %v1050
        %vm1124 = vcmp.eq.s32.totalorder %v933, %v1064
        %vm1125 = vcmp.eq.s32.totalorder %v933, %v1078
        %vm1126 = vcmp.eq.s32.totalorder %v933, %v1092
        %vm1127 = vcmp.eq.s32.totalorder %v933, %v1106
        %vm1128 = vcmp.eq.s32.totalorder %v933, %v1120
        %v1129 = vsel %vm1121, %v924, 0.0
        %v1130 = vsel %vm1122, %v925, 0.0
        %v1131 = vsel %vm1123, %v926, 0.0
        %v1132 = vsel %vm1124, %v927, 0.0
        %v1133 = vsel %vm1125, %v928, 0.0
        %v1134 = vsel %vm1126, %v929, 0.0
        %v1135 = vsel %vm1127, %v930, 0.0
        %v1136 = vsel %vm1128, %v931, 0.0
        %1137 = vadd.xlane.f32.xlu0 %v1129
        %v1138 = vpop.xlane.xlu0 %1137
        %1139 = vadd.xlane.f32.xlu0 %v1130
        %v1140 = vpop.xlane.xlu0 %1139
        %1141 = vadd.xlane.f32.xlu0 %v1131
        %v1142 = vpop.xlane.xlu0 %1141
        %1143 = vadd.xlane.f32.xlu0 %v1132
        %v1144 = vpop.xlane.xlu0 %1143
        %1145 = vadd.xlane.f32.xlu0 %v1133
        %v1146 = vpop.xlane.xlu0 %1145
        %1147 = vadd.xlane.f32.xlu0 %v1134
        %v1148 = vpop.xlane.xlu0 %1147
        %1149 = vadd.xlane.f32.xlu0 %v1135
        %v1150 = vpop.xlane.xlu0 %1149
        %1151 = vadd.xlane.f32.xlu0 %v1136
        %v1152 = vpop.xlane.xlu0 %1151
        %v1153 = vsel %vm1121, 3e+38, %v969
        %v1154 = vsel %vm1122, 3e+38, %v970
        %v1155 = vsel %vm1123, 3e+38, %v971
        %v1156 = vsel %vm1124, 3e+38, %v972
        %v1157 = vsel %vm1125, 3e+38, %v973
        %v1158 = vsel %vm1126, 3e+38, %v974
        %v1159 = vsel %vm1127, 3e+38, %v975
        %v1160 = vsel %vm1128, 3e+38, %v976
        %1161 = vmin.xlane.f32.xlu0 %v1153
        %v1162 = vpop.xlane.xlu0 %1161
        %1163 = vmin.xlane.f32.xlu0 %v1154
        %v1164 = vpop.xlane.xlu0 %1163
        %1165 = vmin.xlane.f32.xlu0 %v1155
        %v1166 = vpop.xlane.xlu0 %1165
        %1167 = vmin.xlane.f32.xlu0 %v1156
        %v1168 = vpop.xlane.xlu0 %1167
        %1169 = vmin.xlane.f32.xlu0 %v1157
        %v1170 = vpop.xlane.xlu0 %1169
        %1171 = vmin.xlane.f32.xlu0 %v1158
        %v1172 = vpop.xlane.xlu0 %1171
        %1173 = vmin.xlane.f32.xlu0 %v1159
        %v1174 = vpop.xlane.xlu0 %1173
        %1175 = vmin.xlane.f32.xlu0 %v1160
        %v1176 = vpop.xlane.xlu0 %1175
        %vm1177 = vcmp.eq.f32.partialorder %v1153, %v1162
        %vm1178 = vcmp.eq.f32.partialorder %v1154, %v1164
        %vm1179 = vcmp.eq.f32.partialorder %v1155, %v1166
        %vm1180 = vcmp.eq.f32.partialorder %v1156, %v1168
        %vm1181 = vcmp.eq.f32.partialorder %v1157, %v1170
        %vm1182 = vcmp.eq.f32.partialorder %v1158, %v1172
        %vm1183 = vcmp.eq.f32.partialorder %v1159, %v1174
        %vm1184 = vcmp.eq.f32.partialorder %v1160, %v1176
        %v1185 = vsel %vm1177, %v933, 128
        %v1186 = vsel %vm1178, %v933, 128
        %v1187 = vsel %vm1179, %v933, 128
        %v1188 = vsel %vm1180, %v933, 128
        %v1189 = vsel %vm1181, %v933, 128
        %v1190 = vsel %vm1182, %v933, 128
        %v1191 = vsel %vm1183, %v933, 128
        %v1192 = vsel %vm1184, %v933, 128
        %v1193 = vand.u32 %v1185, 65535
        %v1194 = vshra.s32 %v1185, 16
        %v1195 = vcvt.s32.f32 %v1193
        %v1196 = vcvt.s32.f32 %v1194
        %1197 = vmin.xlane.f32.xlu0 %v1196
        %v1198 = vpop.xlane.xlu0 %1197
        %vm1199 = vcmp.eq.f32.partialorder %v1196, %v1198
        %v1200 = vsel %vm1199, %v1195, inf
        %1201 = vmin.xlane.f32.xlu0 %v1200
        %v1202 = vpop.xlane.xlu0 %1201
        %v1203 = vcvt.f32.s32 %v1202
        %v1204 = vcvt.f32.s32 %v1198
        %v1205 = vshll.u32 %v1204, 16
        %v1206 = vadd.s32 %v1205, %v1203
        %v1207 = vand.u32 %v1186, 65535
        %v1208 = vshra.s32 %v1186, 16
        %v1209 = vcvt.s32.f32 %v1207
        %v1210 = vcvt.s32.f32 %v1208
        %1211 = vmin.xlane.f32.xlu0 %v1210
        %v1212 = vpop.xlane.xlu0 %1211
        %vm1213 = vcmp.eq.f32.partialorder %v1210, %v1212
        %v1214 = vsel %vm1213, %v1209, inf
        %1215 = vmin.xlane.f32.xlu0 %v1214
        %v1216 = vpop.xlane.xlu0 %1215
        %v1217 = vcvt.f32.s32 %v1216
        %v1218 = vcvt.f32.s32 %v1212
        %v1219 = vshll.u32 %v1218, 16
        %v1220 = vadd.s32 %v1219, %v1217
        %v1221 = vand.u32 %v1187, 65535
        %v1222 = vshra.s32 %v1187, 16
        %v1223 = vcvt.s32.f32 %v1221
        %v1224 = vcvt.s32.f32 %v1222
        %1225 = vmin.xlane.f32.xlu0 %v1224
        %v1226 = vpop.xlane.xlu0 %1225
        %vm1227 = vcmp.eq.f32.partialorder %v1224, %v1226
        %v1228 = vsel %vm1227, %v1223, inf
        %1229 = vmin.xlane.f32.xlu0 %v1228
        %v1230 = vpop.xlane.xlu0 %1229
        %v1231 = vcvt.f32.s32 %v1230
        %v1232 = vcvt.f32.s32 %v1226
        %v1233 = vshll.u32 %v1232, 16
        %v1234 = vadd.s32 %v1233, %v1231
        %v1235 = vand.u32 %v1188, 65535
        %v1236 = vshra.s32 %v1188, 16
        %v1237 = vcvt.s32.f32 %v1235
        %v1238 = vcvt.s32.f32 %v1236
        %1239 = vmin.xlane.f32.xlu0 %v1238
        %v1240 = vpop.xlane.xlu0 %1239
        %vm1241 = vcmp.eq.f32.partialorder %v1238, %v1240
        %v1242 = vsel %vm1241, %v1237, inf
        %1243 = vmin.xlane.f32.xlu0 %v1242
        %v1244 = vpop.xlane.xlu0 %1243
        %v1245 = vcvt.f32.s32 %v1244
        %v1246 = vcvt.f32.s32 %v1240
        %v1247 = vshll.u32 %v1246, 16
        %v1248 = vadd.s32 %v1247, %v1245
        %v1249 = vand.u32 %v1189, 65535
        %v1250 = vshra.s32 %v1189, 16
        %v1251 = vcvt.s32.f32 %v1249
        %v1252 = vcvt.s32.f32 %v1250
        %1253 = vmin.xlane.f32.xlu0 %v1252
        %v1254 = vpop.xlane.xlu0 %1253
        %vm1255 = vcmp.eq.f32.partialorder %v1252, %v1254
        %v1256 = vsel %vm1255, %v1251, inf
        %1257 = vmin.xlane.f32.xlu0 %v1256
        %v1258 = vpop.xlane.xlu0 %1257
        %v1259 = vcvt.f32.s32 %v1258
        %v1260 = vcvt.f32.s32 %v1254
        %v1261 = vshll.u32 %v1260, 16
        %v1262 = vadd.s32 %v1261, %v1259
        %v1263 = vand.u32 %v1190, 65535
        %v1264 = vshra.s32 %v1190, 16
        %v1265 = vcvt.s32.f32 %v1263
        %v1266 = vcvt.s32.f32 %v1264
        %1267 = vmin.xlane.f32.xlu0 %v1266
        %v1268 = vpop.xlane.xlu0 %1267
        %vm1269 = vcmp.eq.f32.partialorder %v1266, %v1268
        %v1270 = vsel %vm1269, %v1265, inf
        %1271 = vmin.xlane.f32.xlu0 %v1270
        %v1272 = vpop.xlane.xlu0 %1271
        %v1273 = vcvt.f32.s32 %v1272
        %v1274 = vcvt.f32.s32 %v1268
        %v1275 = vshll.u32 %v1274, 16
        %v1276 = vadd.s32 %v1275, %v1273
        %v1277 = vand.u32 %v1191, 65535
        %v1278 = vshra.s32 %v1191, 16
        %v1279 = vcvt.s32.f32 %v1277
        %v1280 = vcvt.s32.f32 %v1278
        %1281 = vmin.xlane.f32.xlu0 %v1280
        %v1282 = vpop.xlane.xlu0 %1281
        %vm1283 = vcmp.eq.f32.partialorder %v1280, %v1282
        %v1284 = vsel %vm1283, %v1279, inf
        %1285 = vmin.xlane.f32.xlu0 %v1284
        %v1286 = vpop.xlane.xlu0 %1285
        %v1287 = vcvt.f32.s32 %v1286
        %v1288 = vcvt.f32.s32 %v1282
        %v1289 = vshll.u32 %v1288, 16
        %v1290 = vadd.s32 %v1289, %v1287
        %v1291 = vand.u32 %v1192, 65535
        %v1292 = vshra.s32 %v1192, 16
        %v1293 = vcvt.s32.f32 %v1291
        %v1294 = vcvt.s32.f32 %v1292
        %1295 = vmin.xlane.f32.xlu0 %v1294
        %v1296 = vpop.xlane.xlu0 %1295
        %vm1297 = vcmp.eq.f32.partialorder %v1294, %v1296
        %v1298 = vsel %vm1297, %v1293, inf
        %1299 = vmin.xlane.f32.xlu0 %v1298
        %v1300 = vpop.xlane.xlu0 %1299
        %v1301 = vcvt.f32.s32 %v1300
        %v1302 = vcvt.f32.s32 %v1296
        %v1303 = vshll.u32 %v1302, 16
        %v1304 = vadd.s32 %v1303, %v1301
        %vm1305 = vcmp.eq.s32.totalorder %v933, %v1206
        %vm1306 = vcmp.eq.s32.totalorder %v933, %v1220
        %vm1307 = vcmp.eq.s32.totalorder %v933, %v1234
        %vm1308 = vcmp.eq.s32.totalorder %v933, %v1248
        %vm1309 = vcmp.eq.s32.totalorder %v933, %v1262
        %vm1310 = vcmp.eq.s32.totalorder %v933, %v1276
        %vm1311 = vcmp.eq.s32.totalorder %v933, %v1290
        %vm1312 = vcmp.eq.s32.totalorder %v933, %v1304
        %v1313 = vsel %vm1305, %v924, 0.0
        %v1314 = vsel %vm1306, %v925, 0.0
        %v1315 = vsel %vm1307, %v926, 0.0
        %v1316 = vsel %vm1308, %v927, 0.0
        %v1317 = vsel %vm1309, %v928, 0.0
        %v1318 = vsel %vm1310, %v929, 0.0
        %v1319 = vsel %vm1311, %v930, 0.0
        %v1320 = vsel %vm1312, %v931, 0.0
        %1321 = vadd.xlane.f32.xlu0 %v1313
        %v1322 = vpop.xlane.xlu0 %1321
        %1323 = vadd.xlane.f32.xlu0 %v1314
        %v1324 = vpop.xlane.xlu0 %1323
        %1325 = vadd.xlane.f32.xlu0 %v1315
        %v1326 = vpop.xlane.xlu0 %1325
        %1327 = vadd.xlane.f32.xlu0 %v1316
        %v1328 = vpop.xlane.xlu0 %1327
        %1329 = vadd.xlane.f32.xlu0 %v1317
        %v1330 = vpop.xlane.xlu0 %1329
        %1331 = vadd.xlane.f32.xlu0 %v1318
        %v1332 = vpop.xlane.xlu0 %1331
        %1333 = vadd.xlane.f32.xlu0 %v1319
        %v1334 = vpop.xlane.xlu0 %1333
        %1335 = vadd.xlane.f32.xlu0 %v1320
        %v1336 = vpop.xlane.xlu0 %1335
        %v1337 = vsel %vm1305, 3e+38, %v1153
        %v1338 = vsel %vm1306, 3e+38, %v1154
        %v1339 = vsel %vm1307, 3e+38, %v1155
        %v1340 = vsel %vm1308, 3e+38, %v1156
        %v1341 = vsel %vm1309, 3e+38, %v1157
        %v1342 = vsel %vm1310, 3e+38, %v1158
        %v1343 = vsel %vm1311, 3e+38, %v1159
        %v1344 = vsel %vm1312, 3e+38, %v1160
        %1345 = vmin.xlane.f32.xlu0 %v1337
        %v1346 = vpop.xlane.xlu0 %1345
        %1347 = vmin.xlane.f32.xlu0 %v1338
        %v1348 = vpop.xlane.xlu0 %1347
        %1349 = vmin.xlane.f32.xlu0 %v1339
        %v1350 = vpop.xlane.xlu0 %1349
        %1351 = vmin.xlane.f32.xlu0 %v1340
        %v1352 = vpop.xlane.xlu0 %1351
        %1353 = vmin.xlane.f32.xlu0 %v1341
        %v1354 = vpop.xlane.xlu0 %1353
        %1355 = vmin.xlane.f32.xlu0 %v1342
        %v1356 = vpop.xlane.xlu0 %1355
        %1357 = vmin.xlane.f32.xlu0 %v1343
        %v1358 = vpop.xlane.xlu0 %1357
        %1359 = vmin.xlane.f32.xlu0 %v1344
        %v1360 = vpop.xlane.xlu0 %1359
        %vm1361 = vcmp.eq.f32.partialorder %v1337, %v1346
        %vm1362 = vcmp.eq.f32.partialorder %v1338, %v1348
        %vm1363 = vcmp.eq.f32.partialorder %v1339, %v1350
        %vm1364 = vcmp.eq.f32.partialorder %v1340, %v1352
        %vm1365 = vcmp.eq.f32.partialorder %v1341, %v1354
        %vm1366 = vcmp.eq.f32.partialorder %v1342, %v1356
        %vm1367 = vcmp.eq.f32.partialorder %v1343, %v1358
        %vm1368 = vcmp.eq.f32.partialorder %v1344, %v1360
        %v1369 = vsel %vm1361, %v933, 128
        %v1370 = vsel %vm1362, %v933, 128
        %v1371 = vsel %vm1363, %v933, 128
        %v1372 = vsel %vm1364, %v933, 128
        %v1373 = vsel %vm1365, %v933, 128
        %v1374 = vsel %vm1366, %v933, 128
        %v1375 = vsel %vm1367, %v933, 128
        %v1376 = vsel %vm1368, %v933, 128
        %v1377 = vand.u32 %v1369, 65535
        %v1378 = vshra.s32 %v1369, 16
        %v1379 = vcvt.s32.f32 %v1377
        %v1380 = vcvt.s32.f32 %v1378
        %1381 = vmin.xlane.f32.xlu0 %v1380
        %v1382 = vpop.xlane.xlu0 %1381
        %vm1383 = vcmp.eq.f32.partialorder %v1380, %v1382
        %v1384 = vsel %vm1383, %v1379, inf
        %1385 = vmin.xlane.f32.xlu0 %v1384
        %v1386 = vpop.xlane.xlu0 %1385
        %v1387 = vcvt.f32.s32 %v1386
        %v1388 = vcvt.f32.s32 %v1382
        %v1389 = vshll.u32 %v1388, 16
        %v1390 = vadd.s32 %v1389, %v1387
        %v1391 = vand.u32 %v1370, 65535
        %v1392 = vshra.s32 %v1370, 16
        %v1393 = vcvt.s32.f32 %v1391
        %v1394 = vcvt.s32.f32 %v1392
        %1395 = vmin.xlane.f32.xlu0 %v1394
        %v1396 = vpop.xlane.xlu0 %1395
        %vm1397 = vcmp.eq.f32.partialorder %v1394, %v1396
        %v1398 = vsel %vm1397, %v1393, inf
        %1399 = vmin.xlane.f32.xlu0 %v1398
        %v1400 = vpop.xlane.xlu0 %1399
        %v1401 = vcvt.f32.s32 %v1400
        %v1402 = vcvt.f32.s32 %v1396
        %v1403 = vshll.u32 %v1402, 16
        %v1404 = vadd.s32 %v1403, %v1401
        %v1405 = vand.u32 %v1371, 65535
        %v1406 = vshra.s32 %v1371, 16
        %v1407 = vcvt.s32.f32 %v1405
        %v1408 = vcvt.s32.f32 %v1406
        %1409 = vmin.xlane.f32.xlu0 %v1408
        %v1410 = vpop.xlane.xlu0 %1409
        %vm1411 = vcmp.eq.f32.partialorder %v1408, %v1410
        %v1412 = vsel %vm1411, %v1407, inf
        %1413 = vmin.xlane.f32.xlu0 %v1412
        %v1414 = vpop.xlane.xlu0 %1413
        %v1415 = vcvt.f32.s32 %v1414
        %v1416 = vcvt.f32.s32 %v1410
        %v1417 = vshll.u32 %v1416, 16
        %v1418 = vadd.s32 %v1417, %v1415
        %v1419 = vand.u32 %v1372, 65535
        %v1420 = vshra.s32 %v1372, 16
        %v1421 = vcvt.s32.f32 %v1419
        %v1422 = vcvt.s32.f32 %v1420
        %1423 = vmin.xlane.f32.xlu0 %v1422
        %v1424 = vpop.xlane.xlu0 %1423
        %vm1425 = vcmp.eq.f32.partialorder %v1422, %v1424
        %v1426 = vsel %vm1425, %v1421, inf
        %1427 = vmin.xlane.f32.xlu0 %v1426
        %v1428 = vpop.xlane.xlu0 %1427
        %v1429 = vcvt.f32.s32 %v1428
        %v1430 = vcvt.f32.s32 %v1424
        %v1431 = vshll.u32 %v1430, 16
        %v1432 = vadd.s32 %v1431, %v1429
        %v1433 = vand.u32 %v1373, 65535
        %v1434 = vshra.s32 %v1373, 16
        %v1435 = vcvt.s32.f32 %v1433
        %v1436 = vcvt.s32.f32 %v1434
        %1437 = vmin.xlane.f32.xlu0 %v1436
        %v1438 = vpop.xlane.xlu0 %1437
        %vm1439 = vcmp.eq.f32.partialorder %v1436, %v1438
        %v1440 = vsel %vm1439, %v1435, inf
        %1441 = vmin.xlane.f32.xlu0 %v1440
        %v1442 = vpop.xlane.xlu0 %1441
        %v1443 = vcvt.f32.s32 %v1442
        %v1444 = vcvt.f32.s32 %v1438
        %v1445 = vshll.u32 %v1444, 16
        %v1446 = vadd.s32 %v1445, %v1443
        %v1447 = vand.u32 %v1374, 65535
        %v1448 = vshra.s32 %v1374, 16
        %v1449 = vcvt.s32.f32 %v1447
        %v1450 = vcvt.s32.f32 %v1448
        %1451 = vmin.xlane.f32.xlu0 %v1450
        %v1452 = vpop.xlane.xlu0 %1451
        %vm1453 = vcmp.eq.f32.partialorder %v1450, %v1452
        %v1454 = vsel %vm1453, %v1449, inf
        %1455 = vmin.xlane.f32.xlu0 %v1454
        %v1456 = vpop.xlane.xlu0 %1455
        %v1457 = vcvt.f32.s32 %v1456
        %v1458 = vcvt.f32.s32 %v1452
        %v1459 = vshll.u32 %v1458, 16
        %v1460 = vadd.s32 %v1459, %v1457
        %v1461 = vand.u32 %v1375, 65535
        %v1462 = vshra.s32 %v1375, 16
        %v1463 = vcvt.s32.f32 %v1461
        %v1464 = vcvt.s32.f32 %v1462
        %1465 = vmin.xlane.f32.xlu0 %v1464
        %v1466 = vpop.xlane.xlu0 %1465
        %vm1467 = vcmp.eq.f32.partialorder %v1464, %v1466
        %v1468 = vsel %vm1467, %v1463, inf
        %1469 = vmin.xlane.f32.xlu0 %v1468
        %v1470 = vpop.xlane.xlu0 %1469
        %v1471 = vcvt.f32.s32 %v1470
        %v1472 = vcvt.f32.s32 %v1466
        %v1473 = vshll.u32 %v1472, 16
        %v1474 = vadd.s32 %v1473, %v1471
        %v1475 = vand.u32 %v1376, 65535
        %v1476 = vshra.s32 %v1376, 16
        %v1477 = vcvt.s32.f32 %v1475
        %v1478 = vcvt.s32.f32 %v1476
        %1479 = vmin.xlane.f32.xlu0 %v1478
        %v1480 = vpop.xlane.xlu0 %1479
        %vm1481 = vcmp.eq.f32.partialorder %v1478, %v1480
        %v1482 = vsel %vm1481, %v1477, inf
        %1483 = vmin.xlane.f32.xlu0 %v1482
        %v1484 = vpop.xlane.xlu0 %1483
        %v1485 = vcvt.f32.s32 %v1484
        %v1486 = vcvt.f32.s32 %v1480
        %v1487 = vshll.u32 %v1486, 16
        %v1488 = vadd.s32 %v1487, %v1485
        %vm1489 = vcmp.eq.s32.totalorder %v933, %v1390
        %vm1490 = vcmp.eq.s32.totalorder %v933, %v1404
        %vm1491 = vcmp.eq.s32.totalorder %v933, %v1418
        %vm1492 = vcmp.eq.s32.totalorder %v933, %v1432
        %vm1493 = vcmp.eq.s32.totalorder %v933, %v1446
        %vm1494 = vcmp.eq.s32.totalorder %v933, %v1460
        %vm1495 = vcmp.eq.s32.totalorder %v933, %v1474
        %vm1496 = vcmp.eq.s32.totalorder %v933, %v1488
        %v1497 = vsel %vm1489, %v924, 0.0
        %v1498 = vsel %vm1490, %v925, 0.0
        %v1499 = vsel %vm1491, %v926, 0.0
        %v1500 = vsel %vm1492, %v927, 0.0
        %v1501 = vsel %vm1493, %v928, 0.0
        %v1502 = vsel %vm1494, %v929, 0.0
        %v1503 = vsel %vm1495, %v930, 0.0
        %v1504 = vsel %vm1496, %v931, 0.0
        %1505 = vadd.xlane.f32.xlu0 %v1497
        %v1506 = vpop.xlane.xlu0 %1505
        %1507 = vadd.xlane.f32.xlu0 %v1498
        %v1508 = vpop.xlane.xlu0 %1507
        %1509 = vadd.xlane.f32.xlu0 %v1499
        %v1510 = vpop.xlane.xlu0 %1509
        %1511 = vadd.xlane.f32.xlu0 %v1500
        %v1512 = vpop.xlane.xlu0 %1511
        %1513 = vadd.xlane.f32.xlu0 %v1501
        %v1514 = vpop.xlane.xlu0 %1513
        %1515 = vadd.xlane.f32.xlu0 %v1502
        %v1516 = vpop.xlane.xlu0 %1515
        %1517 = vadd.xlane.f32.xlu0 %v1503
        %v1518 = vpop.xlane.xlu0 %1517
        %1519 = vadd.xlane.f32.xlu0 %v1504
        %v1520 = vpop.xlane.xlu0 %1519
        %v1521 = vrsqrt.pop %v1138
        %v1522 = vmul.f32 %v1138, %v1521
        %vm1523 = vcmp.eq.f32.partialorder %v1138, inf
        %v1524 = vsel %vm1523, %v1138, %v1522
        %vm1525 = vcmp.eq.f32.partialorder %v1138, 0.0
        %v1526 = vand.u32 %v1138, 2147483648
        %v1527 = vsel %vm1525, %v1526, %v1524
        %v1528 = vrsqrt.pop %v1140
        %v1529 = vmul.f32 %v1140, %v1528
        %vm1530 = vcmp.eq.f32.partialorder %v1140, inf
        %v1531 = vsel %vm1530, %v1140, %v1529
        %vm1532 = vcmp.eq.f32.partialorder %v1140, 0.0
        %v1533 = vand.u32 %v1140, 2147483648
        %v1534 = vsel %vm1532, %v1533, %v1531
        %v1535 = vrsqrt.pop %v1142
        %v1536 = vmul.f32 %v1142, %v1535
        %vm1537 = vcmp.eq.f32.partialorder %v1142, inf
        %v1538 = vsel %vm1537, %v1142, %v1536
        %vm1539 = vcmp.eq.f32.partialorder %v1142, 0.0
        %v1540 = vand.u32 %v1142, 2147483648
        %v1541 = vsel %vm1539, %v1540, %v1538
        %v1542 = vrsqrt.pop %v1144
        %v1543 = vmul.f32 %v1144, %v1542
        %vm1544 = vcmp.eq.f32.partialorder %v1144, inf
        %v1545 = vsel %vm1544, %v1144, %v1543
        %vm1546 = vcmp.eq.f32.partialorder %v1144, 0.0
        %v1547 = vand.u32 %v1144, 2147483648
        %v1548 = vsel %vm1546, %v1547, %v1545
        %v1549 = vrsqrt.pop %v1146
        %v1550 = vmul.f32 %v1146, %v1549
        %vm1551 = vcmp.eq.f32.partialorder %v1146, inf
        %v1552 = vsel %vm1551, %v1146, %v1550
        %vm1553 = vcmp.eq.f32.partialorder %v1146, 0.0
        %v1554 = vand.u32 %v1146, 2147483648
        %v1555 = vsel %vm1553, %v1554, %v1552
        %v1556 = vrsqrt.pop %v1148
        %v1557 = vmul.f32 %v1148, %v1556
        %vm1558 = vcmp.eq.f32.partialorder %v1148, inf
        %v1559 = vsel %vm1558, %v1148, %v1557
        %vm1560 = vcmp.eq.f32.partialorder %v1148, 0.0
        %v1561 = vand.u32 %v1148, 2147483648
        %v1562 = vsel %vm1560, %v1561, %v1559
        %v1563 = vrsqrt.pop %v1150
        %v1564 = vmul.f32 %v1150, %v1563
        %vm1565 = vcmp.eq.f32.partialorder %v1150, inf
        %v1566 = vsel %vm1565, %v1150, %v1564
        %vm1567 = vcmp.eq.f32.partialorder %v1150, 0.0
        %v1568 = vand.u32 %v1150, 2147483648
        %v1569 = vsel %vm1567, %v1568, %v1566
        %v1570 = vrsqrt.pop %v1152
        %v1571 = vmul.f32 %v1152, %v1570
        %vm1572 = vcmp.eq.f32.partialorder %v1152, inf
        %v1573 = vsel %vm1572, %v1152, %v1571
        %vm1574 = vcmp.eq.f32.partialorder %v1152, 0.0
        %v1575 = vand.u32 %v1152, 2147483648
        %v1576 = vsel %vm1574, %v1575, %v1573
        %v1577 = vmul.f32 %v1527, %v1527
        %v1578 = vmul.f32 %v1534, %v1534
        %v1579 = vmul.f32 %v1541, %v1541
        %v1580 = vmul.f32 %v1548, %v1548
        %v1581 = vmul.f32 %v1555, %v1555
        %v1582 = vmul.f32 %v1562, %v1562
        %v1583 = vmul.f32 %v1569, %v1569
        %v1584 = vmul.f32 %v1576, %v1576
        %v1585 = vmul.f32 %v1527, %v1577
        %v1586 = vmul.f32 %v1534, %v1578
        %v1587 = vmul.f32 %v1541, %v1579
        %v1588 = vmul.f32 %v1548, %v1580
        %v1589 = vmul.f32 %v1555, %v1581
        %v1590 = vmul.f32 %v1562, %v1582
        %v1591 = vmul.f32 %v1569, %v1583
        %v1592 = vmul.f32 %v1576, %v1584
        %v1593 = vmul.f32 %v1585, -2.0
        %v1594 = vmul.f32 %v1586, -2.0
        %v1595 = vmul.f32 %v1587, -2.0
        %v1596 = vmul.f32 %v1588, -2.0
        %v1597 = vmul.f32 %v1589, -2.0
        %v1598 = vmul.f32 %v1590, -2.0
        %v1599 = vmul.f32 %v1591, -2.0
        %v1600 = vmul.f32 %v1592, -2.0
        %v1601 = vrsqrt.pop %v1322
        %v1602 = vmul.f32 %v1322, %v1601
        %vm1603 = vcmp.eq.f32.partialorder %v1322, inf
        %v1604 = vsel %vm1603, %v1322, %v1602
        %vm1605 = vcmp.eq.f32.partialorder %v1322, 0.0
        %v1606 = vand.u32 %v1322, 2147483648
        %v1607 = vsel %vm1605, %v1606, %v1604
        %v1608 = vrsqrt.pop %v1324
        %v1609 = vmul.f32 %v1324, %v1608
        %vm1610 = vcmp.eq.f32.partialorder %v1324, inf
        %v1611 = vsel %vm1610, %v1324, %v1609
        %vm1612 = vcmp.eq.f32.partialorder %v1324, 0.0
        %v1613 = vand.u32 %v1324, 2147483648
        %v1614 = vsel %vm1612, %v1613, %v1611
        %v1615 = vrsqrt.pop %v1326
        %v1616 = vmul.f32 %v1326, %v1615
        %vm1617 = vcmp.eq.f32.partialorder %v1326, inf
        %v1618 = vsel %vm1617, %v1326, %v1616
        %vm1619 = vcmp.eq.f32.partialorder %v1326, 0.0
        %v1620 = vand.u32 %v1326, 2147483648
        %v1621 = vsel %vm1619, %v1620, %v1618
        %v1622 = vrsqrt.pop %v1328
        %v1623 = vmul.f32 %v1328, %v1622
        %vm1624 = vcmp.eq.f32.partialorder %v1328, inf
        %v1625 = vsel %vm1624, %v1328, %v1623
        %vm1626 = vcmp.eq.f32.partialorder %v1328, 0.0
        %v1627 = vand.u32 %v1328, 2147483648
        %v1628 = vsel %vm1626, %v1627, %v1625
        %v1629 = vrsqrt.pop %v1330
        %v1630 = vmul.f32 %v1330, %v1629
        %vm1631 = vcmp.eq.f32.partialorder %v1330, inf
        %v1632 = vsel %vm1631, %v1330, %v1630
        %vm1633 = vcmp.eq.f32.partialorder %v1330, 0.0
        %v1634 = vand.u32 %v1330, 2147483648
        %v1635 = vsel %vm1633, %v1634, %v1632
        %v1636 = vrsqrt.pop %v1332
        %v1637 = vmul.f32 %v1332, %v1636
        %vm1638 = vcmp.eq.f32.partialorder %v1332, inf
        %v1639 = vsel %vm1638, %v1332, %v1637
        %vm1640 = vcmp.eq.f32.partialorder %v1332, 0.0
        %v1641 = vand.u32 %v1332, 2147483648
        %v1642 = vsel %vm1640, %v1641, %v1639
        %v1643 = vrsqrt.pop %v1334
        %v1644 = vmul.f32 %v1334, %v1643
        %vm1645 = vcmp.eq.f32.partialorder %v1334, inf
        %v1646 = vsel %vm1645, %v1334, %v1644
        %vm1647 = vcmp.eq.f32.partialorder %v1334, 0.0
        %v1648 = vand.u32 %v1334, 2147483648
        %v1649 = vsel %vm1647, %v1648, %v1646
        %v1650 = vrsqrt.pop %v1336
        %v1651 = vmul.f32 %v1336, %v1650
        %vm1652 = vcmp.eq.f32.partialorder %v1336, inf
        %v1653 = vsel %vm1652, %v1336, %v1651
        %vm1654 = vcmp.eq.f32.partialorder %v1336, 0.0
        %v1655 = vand.u32 %v1336, 2147483648
        %v1656 = vsel %vm1654, %v1655, %v1653
        %v1657 = vmul.f32 %v1607, %v1607
        %v1658 = vmul.f32 %v1614, %v1614
        %v1659 = vmul.f32 %v1621, %v1621
        %v1660 = vmul.f32 %v1628, %v1628
        %v1661 = vmul.f32 %v1635, %v1635
        %v1662 = vmul.f32 %v1642, %v1642
        %v1663 = vmul.f32 %v1649, %v1649
        %v1664 = vmul.f32 %v1656, %v1656
        %v1665 = vmul.f32 %v1607, %v1657
        %v1666 = vmul.f32 %v1614, %v1658
        %v1667 = vmul.f32 %v1621, %v1659
        %v1668 = vmul.f32 %v1628, %v1660
        %v1669 = vmul.f32 %v1635, %v1661
        %v1670 = vmul.f32 %v1642, %v1662
        %v1671 = vmul.f32 %v1649, %v1663
        %v1672 = vmul.f32 %v1656, %v1664
        %v1673 = vmul.f32 %v1665, -2.0
        %v1674 = vmul.f32 %v1666, -2.0
        %v1675 = vmul.f32 %v1667, -2.0
        %v1676 = vmul.f32 %v1668, -2.0
        %v1677 = vmul.f32 %v1669, -2.0
        %v1678 = vmul.f32 %v1670, -2.0
        %v1679 = vmul.f32 %v1671, -2.0
        %v1680 = vmul.f32 %v1672, -2.0
        %v1681 = vrsqrt.pop %v1506
        %v1682 = vmul.f32 %v1506, %v1681
        %vm1683 = vcmp.eq.f32.partialorder %v1506, inf
        %v1684 = vsel %vm1683, %v1506, %v1682
        %vm1685 = vcmp.eq.f32.partialorder %v1506, 0.0
        %v1686 = vand.u32 %v1506, 2147483648
        %v1687 = vsel %vm1685, %v1686, %v1684
        %v1688 = vrsqrt.pop %v1508
        %v1689 = vmul.f32 %v1508, %v1688
        %vm1690 = vcmp.eq.f32.partialorder %v1508, inf
        %v1691 = vsel %vm1690, %v1508, %v1689
        %vm1692 = vcmp.eq.f32.partialorder %v1508, 0.0
        %v1693 = vand.u32 %v1508, 2147483648
        %v1694 = vsel %vm1692, %v1693, %v1691
        %v1695 = vrsqrt.pop %v1510
        %v1696 = vmul.f32 %v1510, %v1695
        %vm1697 = vcmp.eq.f32.partialorder %v1510, inf
        %v1698 = vsel %vm1697, %v1510, %v1696
        %vm1699 = vcmp.eq.f32.partialorder %v1510, 0.0
        %v1700 = vand.u32 %v1510, 2147483648
        %v1701 = vsel %vm1699, %v1700, %v1698
        %v1702 = vrsqrt.pop %v1512
        %v1703 = vmul.f32 %v1512, %v1702
        %vm1704 = vcmp.eq.f32.partialorder %v1512, inf
        %v1705 = vsel %vm1704, %v1512, %v1703
        %vm1706 = vcmp.eq.f32.partialorder %v1512, 0.0
        %v1707 = vand.u32 %v1512, 2147483648
        %v1708 = vsel %vm1706, %v1707, %v1705
        %v1709 = vrsqrt.pop %v1514
        %v1710 = vmul.f32 %v1514, %v1709
        %vm1711 = vcmp.eq.f32.partialorder %v1514, inf
        %v1712 = vsel %vm1711, %v1514, %v1710
        %vm1713 = vcmp.eq.f32.partialorder %v1514, 0.0
        %v1714 = vand.u32 %v1514, 2147483648
        %v1715 = vsel %vm1713, %v1714, %v1712
        %v1716 = vrsqrt.pop %v1516
        %v1717 = vmul.f32 %v1516, %v1716
        %vm1718 = vcmp.eq.f32.partialorder %v1516, inf
        %v1719 = vsel %vm1718, %v1516, %v1717
        %vm1720 = vcmp.eq.f32.partialorder %v1516, 0.0
        %v1721 = vand.u32 %v1516, 2147483648
        %v1722 = vsel %vm1720, %v1721, %v1719
        %v1723 = vrsqrt.pop %v1518
        %v1724 = vmul.f32 %v1518, %v1723
        %vm1725 = vcmp.eq.f32.partialorder %v1518, inf
        %v1726 = vsel %vm1725, %v1518, %v1724
        %vm1727 = vcmp.eq.f32.partialorder %v1518, 0.0
        %v1728 = vand.u32 %v1518, 2147483648
        %v1729 = vsel %vm1727, %v1728, %v1726
        %v1730 = vrsqrt.pop %v1520
        %v1731 = vmul.f32 %v1520, %v1730
        %vm1732 = vcmp.eq.f32.partialorder %v1520, inf
        %v1733 = vsel %vm1732, %v1520, %v1731
        %vm1734 = vcmp.eq.f32.partialorder %v1520, 0.0
        %v1735 = vand.u32 %v1520, 2147483648
        %v1736 = vsel %vm1734, %v1735, %v1733
        %v1737 = vmul.f32 %v1687, %v1687
        %v1738 = vmul.f32 %v1694, %v1694
        %v1739 = vmul.f32 %v1701, %v1701
        %v1740 = vmul.f32 %v1708, %v1708
        %v1741 = vmul.f32 %v1715, %v1715
        %v1742 = vmul.f32 %v1722, %v1722
        %v1743 = vmul.f32 %v1729, %v1729
        %v1744 = vmul.f32 %v1736, %v1736
        %v1745 = vmul.f32 %v1687, %v1737
        %v1746 = vmul.f32 %v1694, %v1738
        %v1747 = vmul.f32 %v1701, %v1739
        %v1748 = vmul.f32 %v1708, %v1740
        %v1749 = vmul.f32 %v1715, %v1741
        %v1750 = vmul.f32 %v1722, %v1742
        %v1751 = vmul.f32 %v1729, %v1743
        %v1752 = vmul.f32 %v1736, %v1744
        %v1753 = vmul.f32 %v1745, -2.0
        %v1754 = vmul.f32 %v1746, -2.0
        %v1755 = vmul.f32 %v1747, -2.0
        %v1756 = vmul.f32 %v1748, -2.0
        %v1757 = vmul.f32 %v1749, -2.0
        %v1758 = vmul.f32 %v1750, -2.0
        %v1759 = vmul.f32 %v1751, -2.0
        %v1760 = vmul.f32 %v1752, -2.0
        %v1761 = vmax.f32 %v1673, %v1753
        %v1762 = vmax.f32 %v1674, %v1754
        %v1763 = vmax.f32 %v1675, %v1755
        %v1764 = vmax.f32 %v1676, %v1756
        %v1765 = vmax.f32 %v1677, %v1757
        %v1766 = vmax.f32 %v1678, %v1758
        %v1767 = vmax.f32 %v1679, %v1759
        %v1768 = vmax.f32 %v1680, %v1760
        %v1769 = vsub.f32 %v1673, %v1761
        %v1770 = vsub.f32 %v1674, %v1762
        %v1771 = vsub.f32 %v1675, %v1763
        %v1772 = vsub.f32 %v1676, %v1764
        %v1773 = vsub.f32 %v1677, %v1765
        %v1774 = vsub.f32 %v1678, %v1766
        %v1775 = vsub.f32 %v1679, %v1767
        %v1776 = vsub.f32 %v1680, %v1768
        %v1777 = vmul.f32 %v1769, 1.442695
        %v1778 = vpow.pop %v1777
        %v1779 = vmul.f32 %v1770, 1.442695
        %v1780 = vpow.pop %v1779
        %v1781 = vmul.f32 %v1771, 1.442695
        %v1782 = vpow.pop %v1781
        %v1783 = vmul.f32 %v1772, 1.442695
        %v1784 = vpow.pop %v1783
        %v1785 = vmul.f32 %v1773, 1.442695
        %v1786 = vpow.pop %v1785
        %v1787 = vmul.f32 %v1774, 1.442695
        %v1788 = vpow.pop %v1787
        %v1789 = vmul.f32 %v1775, 1.442695
        %v1790 = vpow.pop %v1789
        %v1791 = vmul.f32 %v1776, 1.442695
        %v1792 = vpow.pop %v1791
        %v1793 = vsub.f32 %v1753, %v1761
        %v1794 = vsub.f32 %v1754, %v1762
        %v1795 = vsub.f32 %v1755, %v1763
        %v1796 = vsub.f32 %v1756, %v1764
        %v1797 = vsub.f32 %v1757, %v1765
        %v1798 = vsub.f32 %v1758, %v1766
        %v1799 = vsub.f32 %v1759, %v1767
        %v1800 = vsub.f32 %v1760, %v1768
        %v1801 = vmul.f32 %v1793, 1.442695
        %v1802 = vpow.pop %v1801
        %v1803 = vmul.f32 %v1794, 1.442695
        %v1804 = vpow.pop %v1803
        %v1805 = vmul.f32 %v1795, 1.442695
        %v1806 = vpow.pop %v1805
        %v1807 = vmul.f32 %v1796, 1.442695
        %v1808 = vpow.pop %v1807
        %v1809 = vmul.f32 %v1797, 1.442695
        %v1810 = vpow.pop %v1809
        %v1811 = vmul.f32 %v1798, 1.442695
        %v1812 = vpow.pop %v1811
        %v1813 = vmul.f32 %v1799, 1.442695
        %v1814 = vpow.pop %v1813
        %v1815 = vmul.f32 %v1800, 1.442695
        %v1816 = vpow.pop %v1815
        %v1817 = vadd.f32 %v1778, %v1802
        %v1818 = vadd.f32 %v1780, %v1804
        %v1819 = vadd.f32 %v1782, %v1806
        %v1820 = vadd.f32 %v1784, %v1808
        %v1821 = vadd.f32 %v1786, %v1810
        %v1822 = vadd.f32 %v1788, %v1812
        %v1823 = vadd.f32 %v1790, %v1814
        %v1824 = vadd.f32 %v1792, %v1816
        %v1825 = vlog2.pop %v1817
        %v1826 = vmul.f32 %v1825, 0.6931472
        %v1827 = vlog2.pop %v1818
        %v1828 = vmul.f32 %v1827, 0.6931472
        %v1829 = vlog2.pop %v1819
        %v1830 = vmul.f32 %v1829, 0.6931472
        %v1831 = vlog2.pop %v1820
        %v1832 = vmul.f32 %v1831, 0.6931472
        %v1833 = vlog2.pop %v1821
        %v1834 = vmul.f32 %v1833, 0.6931472
        %v1835 = vlog2.pop %v1822
        %v1836 = vmul.f32 %v1835, 0.6931472
        %v1837 = vlog2.pop %v1823
        %v1838 = vmul.f32 %v1837, 0.6931472
        %v1839 = vlog2.pop %v1824
        %v1840 = vmul.f32 %v1839, 0.6931472
        %v1841 = vadd.f32 %v1761, %v1826
        %v1842 = vadd.f32 %v1762, %v1828
        %v1843 = vadd.f32 %v1763, %v1830
        %v1844 = vadd.f32 %v1764, %v1832
        %v1845 = vadd.f32 %v1765, %v1834
        %v1846 = vadd.f32 %v1766, %v1836
        %v1847 = vadd.f32 %v1767, %v1838
        %v1848 = vadd.f32 %v1768, %v1840
        %v1849 = vsub.f32 %v1673, %v1841
        %v1850 = vsub.f32 %v1674, %v1842
        %v1851 = vsub.f32 %v1675, %v1843
        %v1852 = vsub.f32 %v1676, %v1844
        %v1853 = vsub.f32 %v1677, %v1845
        %v1854 = vsub.f32 %v1678, %v1846
        %v1855 = vsub.f32 %v1679, %v1847
        %v1856 = vsub.f32 %v1680, %v1848
        %v1857 = vadd.f32 %v1849, 0.0
        %v1858 = vadd.f32 %v1850, 0.0
        %v1859 = vadd.f32 %v1851, 0.0
        %v1860 = vadd.f32 %v1852, 0.0
        %v1861 = vadd.f32 %v1853, 0.0
        %v1862 = vadd.f32 %v1854, 0.0
        %v1863 = vadd.f32 %v1855, 0.0
        %v1864 = vadd.f32 %v1856, 0.0
        %v1865 = vmax.f32 %v1593, %v1841
        %v1866 = vmax.f32 %v1594, %v1842
        %v1867 = vmax.f32 %v1595, %v1843
        %v1868 = vmax.f32 %v1596, %v1844
        %v1869 = vmax.f32 %v1597, %v1845
        %v1870 = vmax.f32 %v1598, %v1846
        %v1871 = vmax.f32 %v1599, %v1847
        %v1872 = vmax.f32 %v1600, %v1848
        %v1873 = vsub.f32 %v1593, %v1865
        %v1874 = vsub.f32 %v1594, %v1866
        %v1875 = vsub.f32 %v1595, %v1867
        %v1876 = vsub.f32 %v1596, %v1868
        %v1877 = vsub.f32 %v1597, %v1869
        %v1878 = vsub.f32 %v1598, %v1870
        %v1879 = vsub.f32 %v1599, %v1871
        %v1880 = vsub.f32 %v1600, %v1872
        %v1881 = vmul.f32 %v1873, 1.442695
        %v1882 = vpow.pop %v1881
        %v1883 = vmul.f32 %v1874, 1.442695
        %v1884 = vpow.pop %v1883
        %v1885 = vmul.f32 %v1875, 1.442695
        %v1886 = vpow.pop %v1885
        %v1887 = vmul.f32 %v1876, 1.442695
        %v1888 = vpow.pop %v1887
        %v1889 = vmul.f32 %v1877, 1.442695
        %v1890 = vpow.pop %v1889
        %v1891 = vmul.f32 %v1878, 1.442695
        %v1892 = vpow.pop %v1891
        %v1893 = vmul.f32 %v1879, 1.442695
        %v1894 = vpow.pop %v1893
        %v1895 = vmul.f32 %v1880, 1.442695
        %v1896 = vpow.pop %v1895
        %v1897 = vsub.f32 %v1841, %v1865
        %v1898 = vsub.f32 %v1842, %v1866
        %v1899 = vsub.f32 %v1843, %v1867
        %v1900 = vsub.f32 %v1844, %v1868
        %v1901 = vsub.f32 %v1845, %v1869
        %v1902 = vsub.f32 %v1846, %v1870
        %v1903 = vsub.f32 %v1847, %v1871
        %v1904 = vsub.f32 %v1848, %v1872
        %v1905 = vmul.f32 %v1897, 1.442695
        %v1906 = vpow.pop %v1905
        %v1907 = vmul.f32 %v1898, 1.442695
        %v1908 = vpow.pop %v1907
        %v1909 = vmul.f32 %v1899, 1.442695
        %v1910 = vpow.pop %v1909
        %v1911 = vmul.f32 %v1900, 1.442695
        %v1912 = vpow.pop %v1911
        %v1913 = vmul.f32 %v1901, 1.442695
        %v1914 = vpow.pop %v1913
        %v1915 = vmul.f32 %v1902, 1.442695
        %v1916 = vpow.pop %v1915
        %v1917 = vmul.f32 %v1903, 1.442695
        %v1918 = vpow.pop %v1917
        %v1919 = vmul.f32 %v1904, 1.442695
        %v1920 = vpow.pop %v1919
        %v1921 = vadd.f32 %v1882, %v1906
        %v1922 = vadd.f32 %v1884, %v1908
        %v1923 = vadd.f32 %v1886, %v1910
        %v1924 = vadd.f32 %v1888, %v1912
        %v1925 = vadd.f32 %v1890, %v1914
        %v1926 = vadd.f32 %v1892, %v1916
        %v1927 = vadd.f32 %v1894, %v1918
        %v1928 = vadd.f32 %v1896, %v1920
        %v1929 = vlog2.pop %v1921
        %v1930 = vmul.f32 %v1929, 0.6931472
        %v1931 = vlog2.pop %v1922
        %v1932 = vmul.f32 %v1931, 0.6931472
        %v1933 = vlog2.pop %v1923
        %v1934 = vmul.f32 %v1933, 0.6931472
        %v1935 = vlog2.pop %v1924
        %v1936 = vmul.f32 %v1935, 0.6931472
        %v1937 = vlog2.pop %v1925
        %v1938 = vmul.f32 %v1937, 0.6931472
        %v1939 = vlog2.pop %v1926
        %v1940 = vmul.f32 %v1939, 0.6931472
        %v1941 = vlog2.pop %v1927
        %v1942 = vmul.f32 %v1941, 0.6931472
        %v1943 = vlog2.pop %v1928
        %v1944 = vmul.f32 %v1943, 0.6931472
        %v1945 = vadd.f32 %v1865, %v1930
        %v1946 = vadd.f32 %v1866, %v1932
        %v1947 = vadd.f32 %v1867, %v1934
        %v1948 = vadd.f32 %v1868, %v1936
        %v1949 = vadd.f32 %v1869, %v1938
        %v1950 = vadd.f32 %v1870, %v1940
        %v1951 = vadd.f32 %v1871, %v1942
        %v1952 = vadd.f32 %v1872, %v1944
        %v1953 = vsub.f32 %v1593, %v1945
        %v1954 = vsub.f32 %v1594, %v1946
        %v1955 = vsub.f32 %v1595, %v1947
        %v1956 = vsub.f32 %v1596, %v1948
        %v1957 = vsub.f32 %v1597, %v1949
        %v1958 = vsub.f32 %v1598, %v1950
        %v1959 = vsub.f32 %v1599, %v1951
        %v1960 = vsub.f32 %v1600, %v1952
        %v1961 = vadd.f32 %v1857, %v1953
        %v1962 = vadd.f32 %v1858, %v1954
        %v1963 = vadd.f32 %v1859, %v1955
        %v1964 = vadd.f32 %v1860, %v1956
        %v1965 = vadd.f32 %v1861, %v1957
        %v1966 = vadd.f32 %v1862, %v1958
        %v1967 = vadd.f32 %v1863, %v1959
        %v1968 = vadd.f32 %v1864, %v1960
        %vm1969 = vcmp.lt.s32.totalorder %v944, 8
        %vm1970 = vcmp.lt.s32.totalorder %v945, 8
        %vm1971 = vcmp.lt.s32.totalorder %v946, 8
        %vm1972 = vcmp.lt.s32.totalorder %v947, 8
        %vm1973 = vcmp.lt.s32.totalorder %v948, 8
        %vm1974 = vcmp.lt.s32.totalorder %v949, 8
        %vm1975 = vcmp.lt.s32.totalorder %v950, 8
        %vm1976 = vcmp.lt.s32.totalorder %v951, 8
        %v1977 = vsub.f32 0.0, %v1961
        %v1978 = vsub.f32 0.0, %v1962
        %v1979 = vsub.f32 0.0, %v1963
        %v1980 = vsub.f32 0.0, %v1964
        %v1981 = vsub.f32 0.0, %v1965
        %v1982 = vsub.f32 0.0, %v1966
        %v1983 = vsub.f32 0.0, %v1967
        %v1984 = vsub.f32 0.0, %v1968
        %v1985 = vsel %vm1969, %v1977, 0.0
        %v1986 = vsel %vm1970, %v1978, 0.0
        %v1987 = vsel %vm1971, %v1979, 0.0
        %v1988 = vsel %vm1972, %v1980, 0.0
        %v1989 = vsel %vm1973, %v1981, 0.0
        %v1990 = vsel %vm1974, %v1982, 0.0
        %v1991 = vsel %vm1975, %v1983, 0.0
        %v1992 = vsel %vm1976, %v1984, 0.0
        %vm1993 = vcmask 7168
        %v1994 = vsel %vm1993, %v1985, 0.0
        %v1995 = vsel %vm1993, %v1986, 0.0
        %v1996 = vadd.f32 %v1994, %v1995
        %v1997 = vsel %vm1993, %v1987, 0.0
        %v1998 = vadd.f32 %v1996, %v1997
        %v1999 = vsel %vm1993, %v1988, 0.0
        %v2000 = vadd.f32 %v1998, %v1999
        %v2001 = vsel %vm1993, %v1989, 0.0
        %v2002 = vadd.f32 %v2000, %v2001
        %v2003 = vsel %vm1993, %v1990, 0.0
        %v2004 = vadd.f32 %v2002, %v2003
        %v2005 = vsel %vm1993, %v1991, 0.0
        %v2006 = vadd.f32 %v2004, %v2005
        %v2007 = vsel %vm1993, %v1992, 0.0
        %v2008 = vadd.f32 %v2006, %v2007
        %2009 = vadd.xlane.f32.xlu0 %v2008
        %v2010 = vpop.xlane.xlu0 %2009
        %v2011 = vrot.slane %v2010, 4
        %v2012 = vadd.f32 %v2010, %v2011
        %v2013 = vrot.slane %v2012, 2
        %v2014 = vadd.f32 %v2012, %v2013
        %v2015 = vrot.slane %v2014, 1
        %v2016 = vadd.f32 %v2014, %v2015
        %s2017 = vtos %v2016
        %v2018 = vstv %s2017
        %2019 = vst [vmem:[%s494] sm:$0xff] %v2018
        %s2020 = sand.u32 %s229, 1
        %s2021 = scalar_lea.sflag [#allocation4], %s2020
        %s2022 = sand.u32 %s229, 1
        %s2023 = smul.addr %s2022, 8
        %s2024 = scalar_lea.vmem [#allocation16], %s2023
        // Predicated region
        $region85: #{hard_darkrank_loss.1} parent=51 // pred_check
          %p2025 = pneg %p239
        $region86: #{hard_darkrank_loss.1} parent=51 // pred_check_branch
          %2027 = sbr.rel (%p2025) target = $region88
        $region87: #{hard_darkrank_loss.1} parent=51 // pred_region
          %s2029 = ssub.s32 128, 128
          %2030 = vsyncadd %s2021, %s2029
          %s2031 = smul.addr %s33, 128
          %s2032 = scalar_lea.hbm %s8, %s2031
          %s2034 = sshll.u32 %s2024, 4
          %s2035 = int_to_ptr.vmem [resolvable:$true] %s2034
          %2037 = dma.vmem_to_hbm [thread:$0]  %s2035, 128, %s2032, %s2021
        $region88: #{hard_darkrank_loss.1} parent=51 // pred_fallthru
          _
      $region52: #{hard_darkrank_loss.1} parent=5 // pred_fallthru
        _
      %p2038 = scmp.le.s32.totalorder 2, %s28
      // Predicated region
      $region89: #{hard_darkrank_loss.1} parent=5 // pred_check
        %p2039 = pneg %p2038
      $region90: #{hard_darkrank_loss.1} parent=5 // pred_check_branch
        %2041 = sbr.rel (%p2039) target = $region92
      $region91: #{hard_darkrank_loss.1} parent=5 // pred_region
        %s2042 = ssub.s32 %s28, 2
        // Predicated region
        $region93: #{hard_darkrank_loss.1} parent=91 // pred_check
          %p2043 = pneg %p245
        $region94: #{hard_darkrank_loss.1} parent=91 // pred_check_branch
          %2045 = sbr.rel (%p2043) target = $region96
        $region95: #{hard_darkrank_loss.1} parent=91 // pred_region
          %s2046 = sand.u32 %s230, 1
          %s2047 = scalar_lea.sflag [#allocation4], %s2046
          %s2048 = sand.u32 %s230, 1
          %s2049 = smul.addr %s2048, 8
          %s2050 = scalar_lea.vmem [#allocation16], %s2049
          %2051 = dma.done %s2047, 128
        $region96: #{hard_darkrank_loss.1} parent=91 // pred_fallthru
          _
      $region92: #{hard_darkrank_loss.1} parent=5 // pred_fallthru
        _
    $region6: #{hard_darkrank_loss.1} parent=1 // loop_footer
      %s32 = sadd.s32 1, %s28
    $region7: #{hard_darkrank_loss.1} parent=1 // loop_footer_branch
      %27 = sbr.rel target = $region3
    $region8: #{hard_darkrank_loss.1} parent=1 // loop_exit
      _
    %2052 = vsyncpa [#allocation3], 1
    %s2053 = scalar_lea.sflag [#allocation3], 1
    %2054 = vsyncpa %s2053, 1
    %2055 = vsyncpa [#allocation6], 1
    %s2056 = scalar_lea.sflag [#allocation6], 1
    %2057 = vsyncpa %s2056, 1
    %2058 = vsyncpa [#allocation9], 1
    %s2059 = scalar_lea.sflag [#allocation9], 1
    %2060 = vsyncpa %s2059, 1
    %2061 = vsyncpa [#allocation12], 1
    %2062 = vsyncpa [#allocation15], 1
    %2063 = vsyncpa [#allocation4], 1
    %s2064 = scalar_lea.sflag [#allocation4], 1
    %2065 = vsyncpa %s2064, 1

</llo_original>
